<compile_context>
chip_gen: v7x
topology: tpu7x:2x2x1
jax: 0.10.0
libtpu: 0.0.40
codegen_flags: <defaults>
</compile_context>

<pallas_src>
import math
from functools import partial

import jax
import jax.numpy as jnp
from jax.experimental import pallas as pl
from jax.experimental.pallas import tpu as pltpu


def _asg_kernel(num_heads, batch, node_num, alpha, mm_dtype,
                x_ref, h_ref, w_in_ref, b_pre_bo_ref, wqkv_ref, b_qkv_ref,
                wo_ref, out_ref):
    f32 = jnp.float32
    N = node_num
    H = wqkv_ref.shape[0]
    hd = H // num_heads

    x = x_ref[...].astype(mm_dtype)          # (B*N, Din)
    h = h_ref[...].astype(mm_dtype)          # (B*N, Din)

    # --- fused fc_adjust_x / fc_adjust -> concat -> fc1 (+ ReLU) ---------------
    # w_in_ref[0] = w_ax @ w1[:H], w_in_ref[1] = w_ah @ w1[H:]; bias pre-folded.
    # No jnp.concatenate: the concat+matmul is two summed matmuls on the MXU.
    pre = (jnp.dot(x, w_in_ref[0], preferred_element_type=f32)
           + jnp.dot(h, w_in_ref[1], preferred_element_type=f32)
           + b_pre_bo_ref[0:1])
    nf = jnp.maximum(pre, 0.0).astype(mm_dtype)          # (B*N, H)

    # --- single fused QKV projection (fc2 folded in, q pre-scaled) -------------
    qkv = (jnp.dot(nf, wqkv_ref[...], preferred_element_type=f32)
           + b_qkv_ref[...])                              # (B*N, 3H), f32

    # Static lane slices of the fused result (cheap; traced once).
    q_heads = [qkv[:, hi * hd:(hi + 1) * hd] for hi in range(num_heads)]
    k_heads = [qkv[:, H + hi * hd:H + (hi + 1) * hd] for hi in range(num_heads)]
    v_heads = [qkv[:, 2 * H + hi * hd:2 * H + (hi + 1) * hd]
               for hi in range(num_heads)]

    bo = b_pre_bo_ref[1:2]                                # (1, H) out-proj bias
                                                          # (pre-scaled by c)

    # --- scores / softmax / similarity are per-batch (row slices, unrolled) ---
    for b in range(batch):
        rows = slice(b * N, (b + 1) * N)
        acc = None
        for hi in range(num_heads):
            q_b = q_heads[hi][rows].astype(mm_dtype)      # (N, hd)
            k_b = k_heads[hi][rows].astype(mm_dtype)
            v_b = v_heads[hi][rows].astype(mm_dtype)
            scores = jax.lax.dot_general(q_b, k_b, (((1,), (1,)), ((), ())),
                                         preferred_element_type=f32)   # (N, N)
            m = jnp.max(scores, axis=-1, keepdims=True)
            e = jnp.exp(scores - m)
            p = e * pl.reciprocal(jnp.sum(e, axis=-1, keepdims=True), approx=True)
            head_out = jnp.dot(p.astype(mm_dtype), v_b,
                               preferred_element_type=f32)              # (N, hd)
            # Output projection applied per head (avoids concatenating heads);
            # wo is pre-scaled by c = 1/sqrt(sqrt(H)+1e-6).
            contrib = jnp.dot(head_out.astype(mm_dtype), wo_ref[hi],
                              preferred_element_type=f32)               # (N, H)
            acc = contrib if acc is None else acc + contrib
        attn_b = acc + bo                                               # (N, H)

        a = attn_b.astype(mm_dtype)
        # similarity scale already folded into wo/bo -> no post-multiply needed.
        sim_b = jax.lax.dot_general(a, a, (((1,), (1,)), ((), ())),
                                    preferred_element_type=f32)         # (N, N)
        adj_b = jnp.maximum(jnp.tanh(alpha * sim_b), 0.0)
        norm_b = adj_b * pl.reciprocal(
            jnp.sum(adj_b, axis=-1, keepdims=True) + 1e-6, approx=True)

        out_ref[0, b] = norm_b
        out_ref[1, b] = adj_b
        out_ref[2, b] = sim_b


def _fold_params(params, num_heads, mm_dtype):
    """Trace-time algebraic folding of the linear chain (outside the kernel).

    In a real model this is done once at weight-load time.  Only f32
    reassociation-level differences vs. the unfused reference.
    """
    H = params["w_ax"].shape[1]
    hd = H // num_heads
    w1_top, w1_bot = params["w1"][:H], params["w1"][H:]

    # fc_adjust_x/fc_adjust + concat + fc1 fused.
    w_in = jnp.stack([params["w_ax"] @ w1_top, params["w_ah"] @ w1_bot], axis=0)
    b_pre = params["b_ax"] @ w1_top + params["b_ah"] @ w1_bot + params["b1"]

    # fc2 folded into q/k/v; query scale folded into q weights/bias.
    scale = 1.0 / math.sqrt(hd)
    wq = params["w2"] @ params["wq"] * scale
    bq = (params["b2"] @ params["wq"] + params["bq"]) * scale
    wk = params["w2"] @ params["wk"]
    bk = params["b2"] @ params["wk"] + params["bk"]
    wv = params["w2"] @ params["wv"]
    bv = params["b2"] @ params["wv"] + params["bv"]

    # Single fused QKV slab: ONE matmul in the kernel.
    wqkv = jnp.concatenate([wq, wk, wv], axis=1)                 # (H, 3H)
    bqkv = jnp.concatenate([bq, bk, bv], axis=1)                 # (1, 3H)

    # Fold the similarity scale into the output projection:
    #   sim = attn @ attn^T / (sqrt(H)+1e-6) = (c*attn) @ (c*attn)^T.
    c = 1.0 / math.sqrt(math.sqrt(H) + 1e-6)
    wo_scaled = params["wo"] * c
    bo_scaled = params["bo"] * c
    wo_h = jnp.stack([wo_scaled[hi * hd:(hi + 1) * hd, :]
                      for hi in range(num_heads)], axis=0)       # (nh, hd, H)
    b_pre_bo = jnp.concatenate([b_pre, bo_scaled], axis=0)       # (2, H)

    # Only MXU operands get the (optional) bf16 cast; biases stay f32.
    return (w_in.astype(mm_dtype), b_pre_bo.astype(jnp.float32),
            wqkv.astype(mm_dtype), bqkv.astype(jnp.float32),
            wo_h.astype(mm_dtype))


def adaptive_similarity_attn(x, hidden, params, *, num_heads, alpha,
                             use_bf16=False):
    B, N, Din = x.shape
    H = params["w_ax"].shape[1]
    assert H % num_heads == 0
    mm_dtype = jnp.bfloat16 if use_bf16 else jnp.float32

    w_in, b_pre_bo, wqkv, bqkv, wo_h = _fold_params(params, num_heads, mm_dtype)

    # Flatten batch into the matmul M dimension: all channel-wise matmuls run
    # on (B*N, C) tiles in a single grid step.
    x_flat = x.reshape(B * N, Din).astype(mm_dtype)
    h_flat = hidden.reshape(B * N, Din).astype(mm_dtype)

    args = (x_flat, h_flat, w_in, b_pre_bo, wqkv, bqkv, wo_h)

    def full_spec(a):
        return pl.BlockSpec(a.shape, lambda i, _nd=a.ndim: (0,) * _nd)

    kernel = partial(_asg_kernel, num_heads, B, N, float(alpha), mm_dtype)

    out = pl.pallas_call(
        kernel,
        grid=(1,),
        in_specs=[full_spec(a) for a in args],
        out_specs=pl.BlockSpec((3, B, N, N), lambda i: (0, 0, 0, 0)),
        out_shape=jax.ShapeDtypeStruct((3, B, N, N), jnp.float32),
        compiler_params=pltpu.CompilerParams(
            dimension_semantics=("arbitrary",)),
    )(*args)
    return out[0], out[1], out[2]


def _reference(x, hidden, params, *, num_heads, alpha):
    """Plain-JAX reference of the same forward pass (for sanity checking)."""
    H = params["w_ax"].shape[1]
    head_dim = H // num_heads
    xh = x @ params["w_ax"] + params["b_ax"]
    hh = hidden @ params["w_ah"] + params["b_ah"]
    nf = jnp.concatenate([xh, hh], axis=-1)
    nf = jax.nn.relu(nf @ params["w1"] + params["b1"])
    nf = nf @ params["w2"] + params["b2"]
    q = nf @ params["wq"] + params["bq"]
    k = nf @ params["wk"] + params["bk"]
    v = nf @ params["wv"] + params["bv"]
    B, N, _ = q.shape
    qh = q.reshape(B, N, num_heads, head_dim).transpose(0, 2, 1, 3) / math.sqrt(head_dim)
    kh = k.reshape(B, N, num_heads, head_dim).transpose(0, 2, 1, 3)
    vh = v.reshape(B, N, num_heads, head_dim).transpose(0, 2, 1, 3)
    p = jax.nn.softmax(jnp.einsum("bhnd,bhmd->bhnm", qh, kh), axis=-1)
    attn = jnp.einsum("bhnm,bhmd->bhnd", p, vh).transpose(0, 2, 1, 3).reshape(B, N, H)
    attn = attn @ params["wo"] + params["bo"]
    sim = jnp.einsum("bnd,bmd->bnm", attn, attn) / (math.sqrt(H) + 1e-6)
    adj = jax.nn.relu(jnp.tanh(alpha * sim))
    norm_adj = adj / (jnp.sum(adj, axis=-1, keepdims=True) + 1e-6)
    return norm_adj, adj, sim


if __name__ == "__main__":
    # x, hidden: (batch, node_num, hidden_channels); adaptive_graph_hidden = 32.
    B, N = 2, 8
    hidden_channels = 32            # in_features of fc_adjust / fc_adjust_x
    H = 32                          # config['adaptive_graph_hidden']
    num_heads = 2                   # config['attn_heads']
    alpha = 1.0

    key = jax.random.PRNGKey(0)
    ks = jax.random.split(key, 20)
    s = 0.1

    def W(k, shape):
        return (s * jax.random.normal(k, shape)).astype(jnp.float32)

    params = {
        # Linear weights stored pre-transposed as (in, out); biases as (1, out).
        "w_ax": W(ks[0], (hidden_channels, H)), "b_ax": W(ks[1], (1, H)),
        "w_ah": W(ks[2], (hidden_channels, H)), "b_ah": W(ks[3], (1, H)),
        "w1":   W(ks[4], (2 * H, H)),           "b1":   W(ks[5], (1, H)),
        "w2":   W(ks[6], (H, H)),               "b2":   W(ks[7], (1, H)),
        "wq":   W(ks[8], (H, H)),               "bq":   W(ks[9], (1, H)),
        "wk":   W(ks[10], (H, H)),              "bk":   W(ks[11], (1, H)),
        "wv":   W(ks[12], (H, H)),              "bv":   W(ks[13], (1, H)),
        "wo":   W(ks[14], (H, H)),              "bo":   W(ks[15], (1, H)),
    }

    x = jax.random.normal(ks[16], (B, N, hidden_channels), dtype=jnp.float32)
    hidden = jax.random.normal(ks[17], (B, N, hidden_channels), dtype=jnp.float32)

    # f32 run (default)
    norm_adj, adj, sim = adaptive_similarity_attn(
        x, hidden, params, num_heads=num_heads, alpha=alpha)
    jax.block_until_ready((norm_adj, adj, sim))

    r_norm_adj, r_adj, r_sim = _reference(
        x, hidden, params, num_heads=num_heads, alpha=alpha)
    # 2e-3 tolerance: EUP approx-reciprocal in softmax/row-norm plus
    # folded-weight f32 reassociation.
    assert jnp.allclose(sim, r_sim, atol=2e-3, rtol=2e-3), "similarity mismatch"
    assert jnp.allclose(adj, r_adj, atol=2e-3, rtol=2e-3), "adj mismatch"
    assert jnp.allclose(norm_adj, r_norm_adj, atol=2e-3, rtol=2e-3), "norm_adj mismatch"

    # bf16-MXU-operand variant (v6e/v7x); accumulation stays f32.
    norm_adj_bf, adj_bf, sim_bf = adaptive_similarity_attn(
        x, hidden, params, num_heads=num_heads, alpha=alpha, use_bf16=True)
    jax.block_until_ready((norm_adj_bf, adj_bf, sim_bf))
    assert bool(jnp.all(jnp.isfinite(norm_adj_bf))
                & jnp.all(jnp.isfinite(adj_bf))
                & jnp.all(jnp.isfinite(sim_bf))), "bf16 run produced non-finite values"
    assert jnp.allclose(sim_bf, r_sim, atol=3e-2, rtol=3e-2), "bf16 similarity mismatch"

    print("KERNEL_OK")
</pallas_src>

<mosaic_0001>
module attributes {stable_mosaic.version = 11 : i64} {
  func.func @_asg_kernel(%arg0: i32, %arg1: memref<16x32xf32, #tpu.memory_space<vmem>>, %arg2: memref<16x32xf32, #tpu.memory_space<vmem>>, %arg3: memref<2x32x32xf32, #tpu.memory_space<vmem>>, %arg4: memref<2x32xf32, #tpu.memory_space<vmem>>, %arg5: memref<32x96xf32, #tpu.memory_space<vmem>>, %arg6: memref<1x96xf32, #tpu.memory_space<vmem>>, %arg7: memref<2x16x32xf32, #tpu.memory_space<vmem>>, %arg8: memref<3x2x8x8xf32, #tpu.memory_space<vmem>>) attributes {dimension_semantics = [#tpu.dimension_semantics<arbitrary>], iteration_bounds = array<i64: 1>, scalar_prefetch = 0 : i64, scratch_operands = 0 : i64, tpu.core_type = #tpu.core_type<tc>, window_params = [{pipeline_mode = #tpu.pipeline_mode<synchronous>, transform_indices = @transform_0, window_bounds = array<i64: 16, 32>}, {pipeline_mode = #tpu.pipeline_mode<synchronous>, transform_indices = @transform_1, window_bounds = array<i64: 16, 32>}, {pipeline_mode = #tpu.pipeline_mode<synchronous>, transform_indices = @transform_2, window_bounds = array<i64: 2, 32, 32>}, {pipeline_mode = #tpu.pipeline_mode<synchronous>, transform_indices = @transform_3, window_bounds = array<i64: 2, 32>}, {pipeline_mode = #tpu.pipeline_mode<synchronous>, transform_indices = @transform_4, window_bounds = array<i64: 32, 96>}, {pipeline_mode = #tpu.pipeline_mode<synchronous>, transform_indices = @transform_5, window_bounds = array<i64: 1, 96>}, {pipeline_mode = #tpu.pipeline_mode<synchronous>, transform_indices = @transform_6, window_bounds = array<i64: 2, 16, 32>}, {pipeline_mode = #tpu.pipeline_mode<synchronous>, transform_indices = @transform_7, window_bounds = array<i64: 3, 2, 8, 8>}]} {
    %c0 = arith.constant 0 : index
    %c0_0 = arith.constant 0 : index
    %0 = vector.load %arg1[%c0, %c0_0] : memref<16x32xf32, #tpu.memory_space<vmem>>, vector<16x32xf32>
    %c0_1 = arith.constant 0 : index
    %c0_2 = arith.constant 0 : index
    %1 = vector.load %arg2[%c0_1, %c0_2] : memref<16x32xf32, #tpu.memory_space<vmem>>, vector<16x32xf32>
    %c0_3 = arith.constant 0 : index
    %c0_4 = arith.constant 0 : index
    %c0_5 = arith.constant 0 : index
    %2 = vector.load %arg3[%c0_3, %c0_4, %c0_5] : memref<2x32x32xf32, #tpu.memory_space<vmem>>, vector<1x32x32xf32>
    %3 = vector.shape_cast %2 : vector<1x32x32xf32> to vector<32x32xf32>
    %cst = arith.constant dense<0.000000e+00> : vector<16x32xf32>
    %4 = tpu.matmul %0, %3, %cst {dimension_numbers = #tpu.dot_dimension_numbers<[1], [0], [0], [1], [0, 0, 1, 1], [], []>} : vector<16x32xf32>, vector<32x32xf32>, vector<16x32xf32> -> vector<16x32xf32>
    %c1 = arith.constant 1 : index
    %c0_6 = arith.constant 0 : index
    %c0_7 = arith.constant 0 : index
    %5 = vector.load %arg3[%c1, %c0_6, %c0_7] : memref<2x32x32xf32, #tpu.memory_space<vmem>>, vector<1x32x32xf32>
    %6 = vector.shape_cast %5 : vector<1x32x32xf32> to vector<32x32xf32>
    %cst_8 = arith.constant dense<0.000000e+00> : vector<16x32xf32>
    %7 = tpu.matmul %1, %6, %cst_8 {dimension_numbers = #tpu.dot_dimension_numbers<[1], [0], [0], [1], [0, 0, 1, 1], [], []>} : vector<16x32xf32>, vector<32x32xf32>, vector<16x32xf32> -> vector<16x32xf32>
    %8 = arith.addf %4, %7 : vector<16x32xf32>
    %c0_9 = arith.constant 0 : index
    %c0_10 = arith.constant 0 : index
    %9 = vector.load %arg4[%c0_9, %c0_10] : memref<2x32xf32, #tpu.memory_space<vmem>>, vector<1x32xf32>
    %10 = vector.broadcast %9 : vector<1x32xf32> to vector<16x32xf32>
    %11 = arith.addf %8, %10 : vector<16x32xf32>
    %cst_11 = arith.constant 0.000000e+00 : f32
    %12 = vector.broadcast %cst_11 : f32 to vector<16x32xf32>
    %13 = arith.maximumf %11, %12 : vector<16x32xf32>
    %c0_12 = arith.constant 0 : index
    %c0_13 = arith.constant 0 : index
    %14 = vector.load %arg5[%c0_12, %c0_13] : memref<32x96xf32, #tpu.memory_space<vmem>>, vector<32x96xf32>
    %cst_14 = arith.constant dense<0.000000e+00> : vector<16x96xf32>
    %15 = tpu.matmul %13, %14, %cst_14 {dimension_numbers = #tpu.dot_dimension_numbers<[1], [0], [0], [1], [0, 0, 1, 1], [], []>} : vector<16x32xf32>, vector<32x96xf32>, vector<16x96xf32> -> vector<16x96xf32>
    %c0_15 = arith.constant 0 : index
    %c0_16 = arith.constant 0 : index
    %16 = vector.load %arg6[%c0_15, %c0_16] : memref<1x96xf32, #tpu.memory_space<vmem>>, vector<1x96xf32>
    %17 = vector.broadcast %16 : vector<1x96xf32> to vector<16x96xf32>
    %18 = arith.addf %15, %17 : vector<16x96xf32>
    %19 = vector.extract_strided_slice %18 {offsets = [0, 0], sizes = [16, 16], strides = [1, 1]} : vector<16x96xf32> to vector<16x16xf32>
    %20 = vector.extract_strided_slice %18 {offsets = [0, 16], sizes = [16, 16], strides = [1, 1]} : vector<16x96xf32> to vector<16x16xf32>
    %21 = vector.extract_strided_slice %18 {offsets = [0, 32], sizes = [16, 16], strides = [1, 1]} : vector<16x96xf32> to vector<16x16xf32>
    %22 = vector.extract_strided_slice %18 {offsets = [0, 48], sizes = [16, 16], strides = [1, 1]} : vector<16x96xf32> to vector<16x16xf32>
    %23 = vector.extract_strided_slice %18 {offsets = [0, 64], sizes = [16, 16], strides = [1, 1]} : vector<16x96xf32> to vector<16x16xf32>
    %24 = vector.extract_strided_slice %18 {offsets = [0, 80], sizes = [16, 16], strides = [1, 1]} : vector<16x96xf32> to vector<16x16xf32>
    %c1_17 = arith.constant 1 : index
    %c0_18 = arith.constant 0 : index
    %25 = vector.load %arg4[%c1_17, %c0_18] : memref<2x32xf32, #tpu.memory_space<vmem>>, vector<1x32xf32>
    %26 = vector.extract_strided_slice %19 {offsets = [0, 0], sizes = [8, 16], strides = [1, 1]} : vector<16x16xf32> to vector<8x16xf32>
    %27 = vector.extract_strided_slice %21 {offsets = [0, 0], sizes = [8, 16], strides = [1, 1]} : vector<16x16xf32> to vector<8x16xf32>
    %28 = vector.extract_strided_slice %23 {offsets = [0, 0], sizes = [8, 16], strides = [1, 1]} : vector<16x16xf32> to vector<8x16xf32>
    %cst_19 = arith.constant dense<0.000000e+00> : vector<8x8xf32>
    %29 = tpu.matmul %26, %27, %cst_19 {dimension_numbers = #tpu.dot_dimension_numbers<[1], [1], [0], [0], [0, 0, 1, 0], [], []>} : vector<8x16xf32>, vector<8x16xf32>, vector<8x8xf32> -> vector<8x8xf32>
    %cst_20 = arith.constant dense<0xFF800000> : vector<8xf32>
    %30 = vector.multi_reduction <maximumf>, %29, %cst_20 [1] : vector<8x8xf32> to vector<8xf32>
    %31 = vector.shape_cast %30 : vector<8xf32> to vector<8x1xf32>
    %32 = vector.broadcast %31 : vector<8x1xf32> to vector<8x8xf32>
    %33 = arith.subf %29, %32 : vector<8x8xf32>
    %34 = math.exp %33 : vector<8x8xf32>
    %cst_21 = arith.constant dense<0.000000e+00> : vector<8xf32>
    %35 = vector.multi_reduction <add>, %34, %cst_21 [1] : vector<8x8xf32> to vector<8xf32>
    %36 = vector.shape_cast %35 : vector<8xf32> to vector<8x1xf32>
    %37 = tpu.reciprocal %36 {approx = true} : vector<8x1xf32> -> vector<8x1xf32>
    %38 = vector.broadcast %37 : vector<8x1xf32> to vector<8x8xf32>
    %39 = arith.mulf %34, %38 : vector<8x8xf32>
    %cst_22 = arith.constant dense<0.000000e+00> : vector<8x16xf32>
    %40 = tpu.matmul %39, %28, %cst_22 {dimension_numbers = #tpu.dot_dimension_numbers<[1], [0], [0], [1], [0, 0, 1, 1], [], []>} : vector<8x8xf32>, vector<8x16xf32>, vector<8x16xf32> -> vector<8x16xf32>
    %c0_23 = arith.constant 0 : index
    %c0_24 = arith.constant 0 : index
    %c0_25 = arith.constant 0 : index
    %41 = vector.load %arg7[%c0_23, %c0_24, %c0_25] : memref<2x16x32xf32, #tpu.memory_space<vmem>>, vector<1x16x32xf32>
    %42 = vector.shape_cast %41 : vector<1x16x32xf32> to vector<16x32xf32>
    %cst_26 = arith.constant dense<0.000000e+00> : vector<8x32xf32>
    %43 = tpu.matmul %40, %42, %cst_26 {dimension_numbers = #tpu.dot_dimension_numbers<[1], [0], [0], [1], [0, 0, 1, 1], [], []>} : vector<8x16xf32>, vector<16x32xf32>, vector<8x32xf32> -> vector<8x32xf32>
    %44 = vector.extract_strided_slice %20 {offsets = [0, 0], sizes = [8, 16], strides = [1, 1]} : vector<16x16xf32> to vector<8x16xf32>
    %45 = vector.extract_strided_slice %22 {offsets = [0, 0], sizes = [8, 16], strides = [1, 1]} : vector<16x16xf32> to vector<8x16xf32>
    %46 = vector.extract_strided_slice %24 {offsets = [0, 0], sizes = [8, 16], strides = [1, 1]} : vector<16x16xf32> to vector<8x16xf32>
    %cst_27 = arith.constant dense<0.000000e+00> : vector<8x8xf32>
    %47 = tpu.matmul %44, %45, %cst_27 {dimension_numbers = #tpu.dot_dimension_numbers<[1], [1], [0], [0], [0, 0, 1, 0], [], []>} : vector<8x16xf32>, vector<8x16xf32>, vector<8x8xf32> -> vector<8x8xf32>
    %cst_28 = arith.constant dense<0xFF800000> : vector<8xf32>
    %48 = vector.multi_reduction <maximumf>, %47, %cst_28 [1] : vector<8x8xf32> to vector<8xf32>
    %49 = vector.shape_cast %48 : vector<8xf32> to vector<8x1xf32>
    %50 = vector.broadcast %49 : vector<8x1xf32> to vector<8x8xf32>
    %51 = arith.subf %47, %50 : vector<8x8xf32>
    %52 = math.exp %51 : vector<8x8xf32>
    %cst_29 = arith.constant dense<0.000000e+00> : vector<8xf32>
    %53 = vector.multi_reduction <add>, %52, %cst_29 [1] : vector<8x8xf32> to vector<8xf32>
    %54 = vector.shape_cast %53 : vector<8xf32> to vector<8x1xf32>
    %55 = tpu.reciprocal %54 {approx = true} : vector<8x1xf32> -> vector<8x1xf32>
    %56 = vector.broadcast %55 : vector<8x1xf32> to vector<8x8xf32>
    %57 = arith.mulf %52, %56 : vector<8x8xf32>
    %cst_30 = arith.constant dense<0.000000e+00> : vector<8x16xf32>
    %58 = tpu.matmul %57, %46, %cst_30 {dimension_numbers = #tpu.dot_dimension_numbers<[1], [0], [0], [1], [0, 0, 1, 1], [], []>} : vector<8x8xf32>, vector<8x16xf32>, vector<8x16xf32> -> vector<8x16xf32>
    %c1_31 = arith.constant 1 : index
    %c0_32 = arith.constant 0 : index
    %c0_33 = arith.constant 0 : index
    %59 = vector.load %arg7[%c1_31, %c0_32, %c0_33] : memref<2x16x32xf32, #tpu.memory_space<vmem>>, vector<1x16x32xf32>
    %60 = vector.shape_cast %59 : vector<1x16x32xf32> to vector<16x32xf32>
    %cst_34 = arith.constant dense<0.000000e+00> : vector<8x32xf32>
    %61 = tpu.matmul %58, %60, %cst_34 {dimension_numbers = #tpu.dot_dimension_numbers<[1], [0], [0], [1], [0, 0, 1, 1], [], []>} : vector<8x16xf32>, vector<16x32xf32>, vector<8x32xf32> -> vector<8x32xf32>
    %62 = arith.addf %43, %61 : vector<8x32xf32>
    %63 = vector.broadcast %25 : vector<1x32xf32> to vector<8x32xf32>
    %64 = arith.addf %62, %63 : vector<8x32xf32>
    %cst_35 = arith.constant dense<0.000000e+00> : vector<8x8xf32>
    %65 = tpu.matmul %64, %64, %cst_35 {dimension_numbers = #tpu.dot_dimension_numbers<[1], [1], [0], [0], [0, 0, 1, 0], [], []>} : vector<8x32xf32>, vector<8x32xf32>, vector<8x8xf32> -> vector<8x8xf32>
    %cst_36 = arith.constant 1.000000e+00 : f32
    %66 = vector.broadcast %cst_36 : f32 to vector<8x8xf32>
    %67 = arith.mulf %66, %65 : vector<8x8xf32>
    %68 = math.tanh %67 : vector<8x8xf32>
    %cst_37 = arith.constant 0.000000e+00 : f32
    %69 = vector.broadcast %cst_37 : f32 to vector<8x8xf32>
    %70 = arith.maximumf %68, %69 : vector<8x8xf32>
    %cst_38 = arith.constant dense<0.000000e+00> : vector<8xf32>
    %71 = vector.multi_reduction <add>, %70, %cst_38 [1] : vector<8x8xf32> to vector<8xf32>
    %72 = vector.shape_cast %71 : vector<8xf32> to vector<8x1xf32>
    %cst_39 = arith.constant 9.99999997E-7 : f32
    %73 = vector.broadcast %cst_39 : f32 to vector<8x1xf32>
    %74 = arith.addf %72, %73 : vector<8x1xf32>
    %75 = tpu.reciprocal %74 {approx = true} : vector<8x1xf32> -> vector<8x1xf32>
    %76 = vector.broadcast %75 : vector<8x1xf32> to vector<8x8xf32>
    %77 = arith.mulf %70, %76 : vector<8x8xf32>
    %c0_40 = arith.constant 0 : index
    %c0_41 = arith.constant 0 : index
    %c0_42 = arith.constant 0 : index
    %c0_43 = arith.constant 0 : index
    %78 = vector.load %arg8[%c0_40, %c0_41, %c0_42, %c0_43] : memref<3x2x8x8xf32, #tpu.memory_space<vmem>>, vector<1x1x8x8xf32>
    %79 = vector.shape_cast %78 : vector<1x1x8x8xf32> to vector<8x8xf32>
    %80 = vector.shape_cast %77 : vector<8x8xf32> to vector<1x1x8x8xf32>
    tpu.vector_store %arg8[%c0_40, %c0_41, %c0_42, %c0_43], %80 {strides = array<i32>} : memref<3x2x8x8xf32, #tpu.memory_space<vmem>>, vector<1x1x8x8xf32>,
    %c1_44 = arith.constant 1 : index
    %c0_45 = arith.constant 0 : index
    %c0_46 = arith.constant 0 : index
    %c0_47 = arith.constant 0 : index
    %81 = vector.load %arg8[%c1_44, %c0_45, %c0_46, %c0_47] : memref<3x2x8x8xf32, #tpu.memory_space<vmem>>, vector<1x1x8x8xf32>
    %82 = vector.shape_cast %81 : vector<1x1x8x8xf32> to vector<8x8xf32>
    %83 = vector.shape_cast %70 : vector<8x8xf32> to vector<1x1x8x8xf32>
    tpu.vector_store %arg8[%c1_44, %c0_45, %c0_46, %c0_47], %83 {strides = array<i32>} : memref<3x2x8x8xf32, #tpu.memory_space<vmem>>, vector<1x1x8x8xf32>,
    %c2 = arith.constant 2 : index
    %c0_48 = arith.constant 0 : index
    %c0_49 = arith.constant 0 : index
    %c0_50 = arith.constant 0 : index
    %84 = vector.load %arg8[%c2, %c0_48, %c0_49, %c0_50] : memref<3x2x8x8xf32, #tpu.memory_space<vmem>>, vector<1x1x8x8xf32>
    %85 = vector.shape_cast %84 : vector<1x1x8x8xf32> to vector<8x8xf32>
    %86 = vector.shape_cast %65 : vector<8x8xf32> to vector<1x1x8x8xf32>
    tpu.vector_store %arg8[%c2, %c0_48, %c0_49, %c0_50], %86 {strides = array<i32>} : memref<3x2x8x8xf32, #tpu.memory_space<vmem>>, vector<1x1x8x8xf32>,
    %87 = vector.extract_strided_slice %19 {offsets = [8, 0], sizes = [8, 16], strides = [1, 1]} : vector<16x16xf32> to vector<8x16xf32>
    %88 = vector.extract_strided_slice %21 {offsets = [8, 0], sizes = [8, 16], strides = [1, 1]} : vector<16x16xf32> to vector<8x16xf32>
    %89 = vector.extract_strided_slice %23 {offsets = [8, 0], sizes = [8, 16], strides = [1, 1]} : vector<16x16xf32> to vector<8x16xf32>
    %cst_51 = arith.constant dense<0.000000e+00> : vector<8x8xf32>
    %90 = tpu.matmul %87, %88, %cst_51 {dimension_numbers = #tpu.dot_dimension_numbers<[1], [1], [0], [0], [0, 0, 1, 0], [], []>} : vector<8x16xf32>, vector<8x16xf32>, vector<8x8xf32> -> vector<8x8xf32>
    %cst_52 = arith.constant dense<0xFF800000> : vector<8xf32>
    %91 = vector.multi_reduction <maximumf>, %90, %cst_52 [1] : vector<8x8xf32> to vector<8xf32>
    %92 = vector.shape_cast %91 : vector<8xf32> to vector<8x1xf32>
    %93 = vector.broadcast %92 : vector<8x1xf32> to vector<8x8xf32>
    %94 = arith.subf %90, %93 : vector<8x8xf32>
    %95 = math.exp %94 : vector<8x8xf32>
    %cst_53 = arith.constant dense<0.000000e+00> : vector<8xf32>
    %96 = vector.multi_reduction <add>, %95, %cst_53 [1] : vector<8x8xf32> to vector<8xf32>
    %97 = vector.shape_cast %96 : vector<8xf32> to vector<8x1xf32>
    %98 = tpu.reciprocal %97 {approx = true} : vector<8x1xf32> -> vector<8x1xf32>
    %99 = vector.broadcast %98 : vector<8x1xf32> to vector<8x8xf32>
    %100 = arith.mulf %95, %99 : vector<8x8xf32>
    %cst_54 = arith.constant dense<0.000000e+00> : vector<8x16xf32>
    %101 = tpu.matmul %100, %89, %cst_54 {dimension_numbers = #tpu.dot_dimension_numbers<[1], [0], [0], [1], [0, 0, 1, 1], [], []>} : vector<8x8xf32>, vector<8x16xf32>, vector<8x16xf32> -> vector<8x16xf32>
    %c0_55 = arith.constant 0 : index
    %c0_56 = arith.constant 0 : index
    %c0_57 = arith.constant 0 : index
    %102 = vector.load %arg7[%c0_55, %c0_56, %c0_57] : memref<2x16x32xf32, #tpu.memory_space<vmem>>, vector<1x16x32xf32>
    %103 = vector.shape_cast %102 : vector<1x16x32xf32> to vector<16x32xf32>
    %cst_58 = arith.constant dense<0.000000e+00> : vector<8x32xf32>
    %104 = tpu.matmul %101, %103, %cst_58 {dimension_numbers = #tpu.dot_dimension_numbers<[1], [0], [0], [1], [0, 0, 1, 1], [], []>} : vector<8x16xf32>, vector<16x32xf32>, vector<8x32xf32> -> vector<8x32xf32>
    %105 = vector.extract_strided_slice %20 {offsets = [8, 0], sizes = [8, 16], strides = [1, 1]} : vector<16x16xf32> to vector<8x16xf32>
    %106 = vector.extract_strided_slice %22 {offsets = [8, 0], sizes = [8, 16], strides = [1, 1]} : vector<16x16xf32> to vector<8x16xf32>
    %107 = vector.extract_strided_slice %24 {offsets = [8, 0], sizes = [8, 16], strides = [1, 1]} : vector<16x16xf32> to vector<8x16xf32>
    %cst_59 = arith.constant dense<0.000000e+00> : vector<8x8xf32>
    %108 = tpu.matmul %105, %106, %cst_59 {dimension_numbers = #tpu.dot_dimension_numbers<[1], [1], [0], [0], [0, 0, 1, 0], [], []>} : vector<8x16xf32>, vector<8x16xf32>, vector<8x8xf32> -> vector<8x8xf32>
    %cst_60 = arith.constant dense<0xFF800000> : vector<8xf32>
    %109 = vector.multi_reduction <maximumf>, %108, %cst_60 [1] : vector<8x8xf32> to vector<8xf32>
    %110 = vector.shape_cast %109 : vector<8xf32> to vector<8x1xf32>
    %111 = vector.broadcast %110 : vector<8x1xf32> to vector<8x8xf32>
    %112 = arith.subf %108, %111 : vector<8x8xf32>
    %113 = math.exp %112 : vector<8x8xf32>
    %cst_61 = arith.constant dense<0.000000e+00> : vector<8xf32>
    %114 = vector.multi_reduction <add>, %113, %cst_61 [1] : vector<8x8xf32> to vector<8xf32>
    %115 = vector.shape_cast %114 : vector<8xf32> to vector<8x1xf32>
    %116 = tpu.reciprocal %115 {approx = true} : vector<8x1xf32> -> vector<8x1xf32>
    %117 = vector.broadcast %116 : vector<8x1xf32> to vector<8x8xf32>
    %118 = arith.mulf %113, %117 : vector<8x8xf32>
    %cst_62 = arith.constant dense<0.000000e+00> : vector<8x16xf32>
    %119 = tpu.matmul %118, %107, %cst_62 {dimension_numbers = #tpu.dot_dimension_numbers<[1], [0], [0], [1], [0, 0, 1, 1], [], []>} : vector<8x8xf32>, vector<8x16xf32>, vector<8x16xf32> -> vector<8x16xf32>
    %c1_63 = arith.constant 1 : index
    %c0_64 = arith.constant 0 : index
    %c0_65 = arith.constant 0 : index
    %120 = vector.load %arg7[%c1_63, %c0_64, %c0_65] : memref<2x16x32xf32, #tpu.memory_space<vmem>>, vector<1x16x32xf32>
    %121 = vector.shape_cast %120 : vector<1x16x32xf32> to vector<16x32xf32>
    %cst_66 = arith.constant dense<0.000000e+00> : vector<8x32xf32>
    %122 = tpu.matmul %119, %121, %cst_66 {dimension_numbers = #tpu.dot_dimension_numbers<[1], [0], [0], [1], [0, 0, 1, 1], [], []>} : vector<8x16xf32>, vector<16x32xf32>, vector<8x32xf32> -> vector<8x32xf32>
    %123 = arith.addf %104, %122 : vector<8x32xf32>
    %124 = vector.broadcast %25 : vector<1x32xf32> to vector<8x32xf32>
    %125 = arith.addf %123, %124 : vector<8x32xf32>
    %cst_67 = arith.constant dense<0.000000e+00> : vector<8x8xf32>
    %126 = tpu.matmul %125, %125, %cst_67 {dimension_numbers = #tpu.dot_dimension_numbers<[1], [1], [0], [0], [0, 0, 1, 0], [], []>} : vector<8x32xf32>, vector<8x32xf32>, vector<8x8xf32> -> vector<8x8xf32>
    %cst_68 = arith.constant 1.000000e+00 : f32
    %127 = vector.broadcast %cst_68 : f32 to vector<8x8xf32>
    %128 = arith.mulf %127, %126 : vector<8x8xf32>
    %129 = math.tanh %128 : vector<8x8xf32>
    %cst_69 = arith.constant 0.000000e+00 : f32
    %130 = vector.broadcast %cst_69 : f32 to vector<8x8xf32>
    %131 = arith.maximumf %129, %130 : vector<8x8xf32>
    %cst_70 = arith.constant dense<0.000000e+00> : vector<8xf32>
    %132 = vector.multi_reduction <add>, %131, %cst_70 [1] : vector<8x8xf32> to vector<8xf32>
    %133 = vector.shape_cast %132 : vector<8xf32> to vector<8x1xf32>
    %cst_71 = arith.constant 9.99999997E-7 : f32
    %134 = vector.broadcast %cst_71 : f32 to vector<8x1xf32>
    %135 = arith.addf %133, %134 : vector<8x1xf32>
    %136 = tpu.reciprocal %135 {approx = true} : vector<8x1xf32> -> vector<8x1xf32>
    %137 = vector.broadcast %136 : vector<8x1xf32> to vector<8x8xf32>
    %138 = arith.mulf %131, %137 : vector<8x8xf32>
    %c0_72 = arith.constant 0 : index
    %c1_73 = arith.constant 1 : index
    %c0_74 = arith.constant 0 : index
    %c0_75 = arith.constant 0 : index
    %139 = vector.load %arg8[%c0_72, %c1_73, %c0_74, %c0_75] : memref<3x2x8x8xf32, #tpu.memory_space<vmem>>, vector<1x1x8x8xf32>
    %140 = vector.shape_cast %139 : vector<1x1x8x8xf32> to vector<8x8xf32>
    %141 = vector.shape_cast %138 : vector<8x8xf32> to vector<1x1x8x8xf32>
    tpu.vector_store %arg8[%c0_72, %c1_73, %c0_74, %c0_75], %141 {strides = array<i32>} : memref<3x2x8x8xf32, #tpu.memory_space<vmem>>, vector<1x1x8x8xf32>,
    %c1_76 = arith.constant 1 : index
    %c1_77 = arith.constant 1 : index
    %c0_78 = arith.constant 0 : index
    %c0_79 = arith.constant 0 : index
    %142 = vector.load %arg8[%c1_76, %c1_77, %c0_78, %c0_79] : memref<3x2x8x8xf32, #tpu.memory_space<vmem>>, vector<1x1x8x8xf32>
    %143 = vector.shape_cast %142 : vector<1x1x8x8xf32> to vector<8x8xf32>
    %144 = vector.shape_cast %131 : vector<8x8xf32> to vector<1x1x8x8xf32>
    tpu.vector_store %arg8[%c1_76, %c1_77, %c0_78, %c0_79], %144 {strides = array<i32>} : memref<3x2x8x8xf32, #tpu.memory_space<vmem>>, vector<1x1x8x8xf32>,
    %c2_80 = arith.constant 2 : index
    %c1_81 = arith.constant 1 : index
    %c0_82 = arith.constant 0 : index
    %c0_83 = arith.constant 0 : index
    %145 = vector.load %arg8[%c2_80, %c1_81, %c0_82, %c0_83] : memref<3x2x8x8xf32, #tpu.memory_space<vmem>>, vector<1x1x8x8xf32>
    %146 = vector.shape_cast %145 : vector<1x1x8x8xf32> to vector<8x8xf32>
    %147 = vector.shape_cast %126 : vector<8x8xf32> to vector<1x1x8x8xf32>
    tpu.vector_store %arg8[%c2_80, %c1_81, %c0_82, %c0_83], %147 {strides = array<i32>} : memref<3x2x8x8xf32, #tpu.memory_space<vmem>>, vector<1x1x8x8xf32>,
    return
  }
  func.func @transform_0(%arg0: i32) -> (i32, i32) {
    %c0_i32 = arith.constant 0 : i32
    %c0_i32_0 = arith.constant 0 : i32
    %c0_i32_1 = arith.constant 0 : i32
    return %c0_i32, %c0_i32_0 : i32, i32
  }
  func.func @transform_1(%arg0: i32) -> (i32, i32) {
    %c0_i32 = arith.constant 0 : i32
    %c0_i32_0 = arith.constant 0 : i32
    %c0_i32_1 = arith.constant 0 : i32
    return %c0_i32, %c0_i32_0 : i32, i32
  }
  func.func @transform_2(%arg0: i32) -> (i32, i32, i32) {
    %c0_i32 = arith.constant 0 : i32
    %c0_i32_0 = arith.constant 0 : i32
    %c0_i32_1 = arith.constant 0 : i32
    %c0_i32_2 = arith.constant 0 : i32
    return %c0_i32, %c0_i32_0, %c0_i32_1 : i32, i32, i32
  }
  func.func @transform_3(%arg0: i32) -> (i32, i32) {
    %c0_i32 = arith.constant 0 : i32
    %c0_i32_0 = arith.constant 0 : i32
    %c0_i32_1 = arith.constant 0 : i32
    return %c0_i32, %c0_i32_0 : i32, i32
  }
  func.func @transform_4(%arg0: i32) -> (i32, i32) {
    %c0_i32 = arith.constant 0 : i32
    %c0_i32_0 = arith.constant 0 : i32
    %c0_i32_1 = arith.constant 0 : i32
    return %c0_i32, %c0_i32_0 : i32, i32
  }
  func.func @transform_5(%arg0: i32) -> (i32, i32) {
    %c0_i32 = arith.constant 0 : i32
    %c0_i32_0 = arith.constant 0 : i32
    %c0_i32_1 = arith.constant 0 : i32
    return %c0_i32, %c0_i32_0 : i32, i32
  }
  func.func @transform_6(%arg0: i32) -> (i32, i32, i32) {
    %c0_i32 = arith.constant 0 : i32
    %c0_i32_0 = arith.constant 0 : i32
    %c0_i32_1 = arith.constant 0 : i32
    %c0_i32_2 = arith.constant 0 : i32
    return %c0_i32, %c0_i32_0, %c0_i32_1 : i32, i32, i32
  }
  func.func @transform_7(%arg0: i32) -> (i32, i32, i32, i32) {
    %c0_i32 = arith.constant 0 : i32
    %c0_i32_0 = arith.constant 0 : i32
    %c0_i32_1 = arith.constant 0 : i32
    %c0_i32_2 = arith.constant 0 : i32
    %c0_i32_3 = arith.constant 0 : i32
    return %c0_i32, %c0_i32_0, %c0_i32_1, %c0_i32_2 : i32, i32, i32, i32
  }
}

</mosaic_0001>

<llo_original>
// kernel: tpu_custom_call.1
$region0: #{tpu_custom_call.1}
  #allocation0 [shape = 'u32[]', space=smem, size = 0x4, offset = 0x4, fixed_abs, tag = 'smem constant byte address 0x4 - core index']
  #allocation1 [shape = 'u32[144,128]{1,0:T(1,128)}', space=vmem, size = 0x12000, scoped, tag = 'internal scratch']
  %s0 = inlined_call_operand.hbm [shape: f32[16,32], index: 0, kind: input, shape index: {}]
  %s1 = inlined_call_operand.hbm [shape: f32[16,32], index: 1, kind: input, shape index: {}]
  %s2 = inlined_call_operand.hbm [shape: f32[2,32,32], index: 2, kind: input, shape index: {}]
  %s3 = inlined_call_operand.vmem [shape: f32[2,32], index: 3, kind: input, shape index: {}]
  %s4 = inlined_call_operand.hbm [shape: f32[32,96], index: 4, kind: input, shape index: {}]
  %s5 = inlined_call_operand.vmem [shape: f32[1,96], index: 5, kind: input, shape index: {}]
  %s6 = inlined_call_operand.hbm [shape: f32[2,16,32], index: 6, kind: input, shape index: {}]
  %s7 = inlined_call_operand.hbm [shape: f32[3,2,8,8], index: 7, kind: output, shape index: {}]
  %s8 = sld [smem:[#allocation0]]
  $region58: #{tpu_custom_call.1} parent=0
    _
  %s10 = ssub.s32 1, %s8
  %s11 = scalar_select 0, %s10, %s8
  $region1: #{tpu_custom_call.1} parent=0
    #allocation2 [shape = 'u8[8192]{0}', space=vmem, size = 0x2000, scoped, tag = 'input window, operand 0, single buffered']
    #allocation3 [shape = 's32[1]{0}', space=sflag, size = 0x4, scoped, tag = 'scoped memory for tpu_custom_call.1']
    #allocation4 [shape = 's32[1]{0}', space=sflag, size = 0x4, scoped, tag = 'scoped memory for tpu_custom_call.1']
    #allocation5 [shape = 'u8[8192]{0}', space=vmem, size = 0x2000, scoped, tag = 'input window, operand 1, single buffered']
    #allocation6 [shape = 's32[1]{0}', space=sflag, size = 0x4, scoped, tag = 'scoped memory for tpu_custom_call.1']
    #allocation7 [shape = 'u8[32768]{0}', space=vmem, size = 0x8000, scoped, tag = 'input window, operand 2, single buffered']
    #allocation8 [shape = 'u8[16384]{0}', space=vmem, size = 0x4000, scoped, tag = 'input window, operand 4, single buffered']
    #allocation9 [shape = 's32[1]{0}', space=sflag, size = 0x4, scoped, tag = 'scoped memory for tpu_custom_call.1']
    #allocation10 [shape = 'u8[16384]{0}', space=vmem, size = 0x4000, scoped, tag = 'input window, operand 6, single buffered']
    #allocation11 [shape = 'u8[24576]{0}', space=vmem, size = 0x6000, scoped, tag = 'output window, operand 0, single buffered']
    %12 = vsyncpa [#allocation3], 0
    %13 = vsyncpa [#allocation6], 0
    %14 = vsyncpa [#allocation9], 0
    %15 = vsyncpa [#allocation4], 0
    // Predicated region
    $region2: #{tpu_custom_call.1} parent=1 // pred_check
      _
    $region3: #{tpu_custom_call.1} parent=1 // pred_check_branch
      %17 = sbr.rel (0) target = $region5
    $region4: #{tpu_custom_call.1} parent=1 // pred_region
      %s19 = ssub.s32 256, 256
      %20 = vsyncadd [#allocation3], %s19
      %s21 = sshll.u32 [#allocation2], 4
      %s22 = int_to_ptr.vmem [resolvable:$true] %s21
      %27 = dma.hbm_to_vmem [thread:$0]  %s0, 256, %s22, [#allocation3], 128, 128, 8
    $region5: #{tpu_custom_call.1} parent=1 // pred_fallthru
      _
    // Predicated region
    $region6: #{tpu_custom_call.1} parent=1 // pred_check
      _
    $region7: #{tpu_custom_call.1} parent=1 // pred_check_branch
      %29 = sbr.rel (0) target = $region9
    $region8: #{tpu_custom_call.1} parent=1 // pred_region
      %s31 = ssub.s32 256, 256
      %32 = vsyncadd [#allocation6], %s31
      %s33 = sshll.u32 [#allocation5], 4
      %s34 = int_to_ptr.vmem [resolvable:$true] %s33
      %39 = dma.hbm_to_vmem [thread:$0]  %s1, 256, %s34, [#allocation6], 128, 128, 8
    $region9: #{tpu_custom_call.1} parent=1 // pred_fallthru
      _
    // Predicated region
    $region10: #{tpu_custom_call.1} parent=1 // pred_check
      _
    $region11: #{tpu_custom_call.1} parent=1 // pred_check_branch
      %41 = sbr.rel (0) target = $region13
    $region12: #{tpu_custom_call.1} parent=1 // pred_region
      %s43 = ssub.s32 1024, 1024
      %44 = vsyncadd [#allocation6], %s43
      %s45 = sshll.u32 [#allocation7], 4
      %s46 = int_to_ptr.vmem [resolvable:$true] %s45
      %51 = dma.hbm_to_vmem [thread:$0]  %s2, 1024, %s46, [#allocation6], 128, 128, 8
    $region13: #{tpu_custom_call.1} parent=1 // pred_fallthru
      _
    // Predicated region
    $region14: #{tpu_custom_call.1} parent=1 // pred_check
      _
    $region15: #{tpu_custom_call.1} parent=1 // pred_check_branch
      %53 = sbr.rel (0) target = $region17
    $region16: #{tpu_custom_call.1} parent=1 // pred_region
      _
    $region17: #{tpu_custom_call.1} parent=1 // pred_fallthru
      _
    // Predicated region
    $region18: #{tpu_custom_call.1} parent=1 // pred_check
      _
    $region19: #{tpu_custom_call.1} parent=1 // pred_check_branch
      %55 = sbr.rel (0) target = $region21
    $region20: #{tpu_custom_call.1} parent=1 // pred_region
      %s57 = ssub.s32 512, 512
      %58 = vsyncadd [#allocation9], %s57
      %s59 = sshll.u32 [#allocation8], 4
      %s60 = int_to_ptr.vmem [resolvable:$true] %s59
      %65 = dma.hbm_to_vmem [thread:$0]  %s4, 512, %s60, [#allocation9], 128, 128, 8
    $region21: #{tpu_custom_call.1} parent=1 // pred_fallthru
      _
    // Predicated region
    $region22: #{tpu_custom_call.1} parent=1 // pred_check
      _
    $region23: #{tpu_custom_call.1} parent=1 // pred_check_branch
      %67 = sbr.rel (0) target = $region25
    $region24: #{tpu_custom_call.1} parent=1 // pred_region
      _
    $region25: #{tpu_custom_call.1} parent=1 // pred_fallthru
      _
    // Predicated region
    $region26: #{tpu_custom_call.1} parent=1 // pred_check
      _
    $region27: #{tpu_custom_call.1} parent=1 // pred_check_branch
      %69 = sbr.rel (0) target = $region29
    $region28: #{tpu_custom_call.1} parent=1 // pred_region
      %s71 = ssub.s32 512, 512
      %72 = vsyncadd [#allocation9], %s71
      %s73 = sshll.u32 [#allocation10], 4
      %s74 = int_to_ptr.vmem [resolvable:$true] %s73
      %79 = dma.hbm_to_vmem [thread:$0]  %s6, 512, %s74, [#allocation9], 128, 128, 8
    $region29: #{tpu_custom_call.1} parent=1 // pred_fallthru
      _
    // Predicated region
    $region30: #{tpu_custom_call.1} parent=1 // pred_check
      _
    $region31: #{tpu_custom_call.1} parent=1 // pred_check_branch
      %81 = sbr.rel (0) target = $region33
    $region32: #{tpu_custom_call.1} parent=1 // pred_region
      %82 = dma.done [#allocation3], 256
    $region33: #{tpu_custom_call.1} parent=1 // pred_fallthru
      _
    // Predicated region
    $region34: #{tpu_custom_call.1} parent=1 // pred_check
      _
    $region35: #{tpu_custom_call.1} parent=1 // pred_check_branch
      %84 = sbr.rel (0) target = $region37
    $region36: #{tpu_custom_call.1} parent=1 // pred_region
      %85 = dma.done [#allocation6], 256
    $region37: #{tpu_custom_call.1} parent=1 // pred_fallthru
      _
    // Predicated region
    $region38: #{tpu_custom_call.1} parent=1 // pred_check
      _
    $region39: #{tpu_custom_call.1} parent=1 // pred_check_branch
      %87 = sbr.rel (0) target = $region41
    $region40: #{tpu_custom_call.1} parent=1 // pred_region
      %88 = dma.done [#allocation6], 1024
    $region41: #{tpu_custom_call.1} parent=1 // pred_fallthru
      _
    // Predicated region
    $region42: #{tpu_custom_call.1} parent=1 // pred_check
      _
    $region43: #{tpu_custom_call.1} parent=1 // pred_check_branch
      %90 = sbr.rel (0) target = $region45
    $region44: #{tpu_custom_call.1} parent=1 // pred_region
      %91 = dma.done [#allocation9], 512
    $region45: #{tpu_custom_call.1} parent=1 // pred_fallthru
      _
    // Predicated region
    $region46: #{tpu_custom_call.1} parent=1 // pred_check
      _
    $region47: #{tpu_custom_call.1} parent=1 // pred_check_branch
      %93 = sbr.rel (0) target = $region49
    $region48: #{tpu_custom_call.1} parent=1 // pred_region
      %94 = dma.done [#allocation9], 512
    $region49: #{tpu_custom_call.1} parent=1 // pred_fallthru
      _
    %v95 = vld [vmem:[#allocation2] sm:$0xff]
    %v96 = vld [vmem:[#allocation2 + $0x8] sm:$0xff]
    %v97 = vld [vmem:[#allocation5] sm:$0xff]
    %v98 = vld [vmem:[#allocation5 + $0x8] sm:$0xff]
    %v99 = vld [vmem:[#allocation7] sm:$0xff]
    %v100 = vld [vmem:[#allocation7 + $0x8] sm:$0xff]
    %v101 = vld [vmem:[#allocation7 + $0x10] sm:$0xff]
    %v102 = vld [vmem:[#allocation7 + $0x18] sm:$0xff]
    %s103 = scalar_lea.vmem [#allocation7], 32
    %v104 = vld [vmem:[%s103] sm:$0xff]
    %v105 = vld [vmem:[%s103 + $0x8] sm:$0xff]
    %v106 = vld [vmem:[%s103 + $0x10] sm:$0xff]
    %v107 = vld [vmem:[%s103 + $0x18] sm:$0xff]
    %vm108 = vcmask 261120
    %v110 = vsel %vm108, %v97, 0
    %v113 = vsel %vm108, %v98, 0
    %115 = vmatprep.subr.mxu0 0.0
    %116 = vmatpush1.msra.mxu0 %v104
    %117 = vmatprep.subr.mxu0 0.0
    %118 = vmatpush1.msra.mxu0 %v105
    %119 = vmatprep.subr.mxu0 0.0
    %120 = vmatpush1.msra.mxu0 %v106
    %121 = vmatprep.subr.mxu0 0.0
    %122 = vmatpush1.msra.mxu0 %v107
    %123 = vmatprep.subr.mxu0 0.0
    %124 = vmatpush1.msra.mxu0 0.0
    %125 = vmatprep.subr.mxu0 0.0
    %126 = vmatpush1.msra.mxu0 0.0
    %127 = vmatprep.subr.mxu0 0.0
    %128 = vmatpush1.msra.mxu0 0.0
    %129 = vmatprep.subr.mxu0 0.0
    %130 = vmatpush1.msra.mxu0 0.0
    %131 = vmatprep.subr.mxu0 0.0
    %132 = vmatpush1.msra.mxu0 0.0
    %133 = vmatprep.subr.mxu0 0.0
    %134 = vmatpush1.msra.mxu0 0.0
    %135 = vmatprep.subr.mxu0 0.0
    %136 = vmatpush1.msra.mxu0 0.0
    %137 = vmatprep.subr.mxu0 0.0
    %138 = vmatpush1.msra.mxu0 0.0
    %139 = vmatprep.subr.mxu0 0.0
    %140 = vmatpush1.msra.mxu0 0.0
    %141 = vmatprep.subr.mxu0 0.0
    %142 = vmatpush1.msra.mxu0 0.0
    %143 = vmatprep.subr.mxu0 0.0
    %144 = vmatpush1.msra.mxu0 0.0
    %145 = vmatprep.subr.mxu0 0.0
    %146 = vmatpush1.msra.mxu0 0.0
    %147 = vmatprep.subr.mxu0 0.0
    %148 = vmatpush1.msra.mxu0 0.0
    %149 = vmatprep.subr.mxu0 0.0
    %150 = vmatpush1.msra.mxu0 0.0
    %151 = vmatprep.subr.mxu0 0.0
    %152 = vmatpush1.msra.mxu0 0.0
    %153 = vmatprep.subr.mxu0 0.0
    %154 = vmatpush1.msra.mxu0 0.0
    %155 = vmatprep.subr.mxu0 0.0
    %156 = vmatpush1.msra.mxu0 0.0
    %157 = vmatprep.subr.mxu0 0.0
    %158 = vmatpush1.msra.mxu0 0.0
    %159 = vmatprep.subr.mxu0 0.0
    %160 = vmatpush1.msra.mxu0 0.0
    %161 = vmatprep.subr.mxu0 0.0
    %162 = vmatpush1.msra.mxu0 0.0
    %163 = vmatprep.subr.mxu0 0.0
    %164 = vmatpush1.msra.mxu0 0.0
    %165 = vmatprep.subr.mxu0 0.0
    %166 = vmatpush1.msra.mxu0 0.0
    %167 = vmatprep.subr.mxu0 0.0
    %168 = vmatpush1.msra.mxu0 0.0
    %169 = vmatprep.subr.mxu0 0.0
    %170 = vmatpush1.msra.mxu0 0.0
    %171 = vmatprep.subr.mxu0 0.0
    %172 = vmatpush1.msra.mxu0 0.0
    %173 = vmatprep.subr.mxu0 0.0
    %174 = vmatpush1.msra.mxu0 0.0
    %175 = vmatprep.subr.mxu0 0.0
    %176 = vmatpush1.msra.mxu0 0.0
    %177 = vmatprep.subr.mxu0 0.0
    %178 = vmatpush1.msra.mxu0 0.0
    %179 = vmatprep.mubr.f32.mxu0 0.0
    %180 = vmatmul.mubr.f32.gmra.mrb[0].mxu0 %v110
    %v181 = vpop.f32.mrb[0].mxu0
    %v182 = vadd.f32 0.0, %v181
    %v183 = vpop.f32.mrb[0].mxu0
    %184 = vmatprep.mubr.f32.mxu0 0.0
    %185 = vmatmul.mubr.f32.gmra.mrb[0].mxu0 %v113
    %v186 = vpop.f32.mrb[0].mxu0
    %v187 = vadd.f32 0.0, %v186
    %v188 = vpop.f32.mrb[0].mxu0
    %189 = vdwg.mxu0
    %v191 = vsel %vm108, %v95, 0
    %v194 = vsel %vm108, %v96, 0
    %196 = vmatprep.subr.mxu0 0.0
    %197 = vmatpush1.msra.mxu0 %v99
    %198 = vmatprep.subr.mxu0 0.0
    %199 = vmatpush1.msra.mxu0 %v100
    %200 = vmatprep.subr.mxu0 0.0
    %201 = vmatpush1.msra.mxu0 %v101
    %202 = vmatprep.subr.mxu0 0.0
    %203 = vmatpush1.msra.mxu0 %v102
    %204 = vmatprep.subr.mxu0 0.0
    %205 = vmatpush1.msra.mxu0 0.0
    %206 = vmatprep.subr.mxu0 0.0
    %207 = vmatpush1.msra.mxu0 0.0
    %208 = vmatprep.subr.mxu0 0.0
    %209 = vmatpush1.msra.mxu0 0.0
    %210 = vmatprep.subr.mxu0 0.0
    %211 = vmatpush1.msra.mxu0 0.0
    %212 = vmatprep.subr.mxu0 0.0
    %213 = vmatpush1.msra.mxu0 0.0
    %214 = vmatprep.subr.mxu0 0.0
    %215 = vmatpush1.msra.mxu0 0.0
    %216 = vmatprep.subr.mxu0 0.0
    %217 = vmatpush1.msra.mxu0 0.0
    %218 = vmatprep.subr.mxu0 0.0
    %219 = vmatpush1.msra.mxu0 0.0
    %220 = vmatprep.subr.mxu0 0.0
    %221 = vmatpush1.msra.mxu0 0.0
    %222 = vmatprep.subr.mxu0 0.0
    %223 = vmatpush1.msra.mxu0 0.0
    %224 = vmatprep.subr.mxu0 0.0
    %225 = vmatpush1.msra.mxu0 0.0
    %226 = vmatprep.subr.mxu0 0.0
    %227 = vmatpush1.msra.mxu0 0.0
    %228 = vmatprep.subr.mxu0 0.0
    %229 = vmatpush1.msra.mxu0 0.0
    %230 = vmatprep.subr.mxu0 0.0
    %231 = vmatpush1.msra.mxu0 0.0
    %232 = vmatprep.subr.mxu0 0.0
    %233 = vmatpush1.msra.mxu0 0.0
    %234 = vmatprep.subr.mxu0 0.0
    %235 = vmatpush1.msra.mxu0 0.0
    %236 = vmatprep.subr.mxu0 0.0
    %237 = vmatpush1.msra.mxu0 0.0
    %238 = vmatprep.subr.mxu0 0.0
    %239 = vmatpush1.msra.mxu0 0.0
    %240 = vmatprep.subr.mxu0 0.0
    %241 = vmatpush1.msra.mxu0 0.0
    %242 = vmatprep.subr.mxu0 0.0
    %243 = vmatpush1.msra.mxu0 0.0
    %244 = vmatprep.subr.mxu0 0.0
    %245 = vmatpush1.msra.mxu0 0.0
    %246 = vmatprep.subr.mxu0 0.0
    %247 = vmatpush1.msra.mxu0 0.0
    %248 = vmatprep.subr.mxu0 0.0
    %249 = vmatpush1.msra.mxu0 0.0
    %250 = vmatprep.subr.mxu0 0.0
    %251 = vmatpush1.msra.mxu0 0.0
    %252 = vmatprep.subr.mxu0 0.0
    %253 = vmatpush1.msra.mxu0 0.0
    %254 = vmatprep.subr.mxu0 0.0
    %255 = vmatpush1.msra.mxu0 0.0
    %256 = vmatprep.subr.mxu0 0.0
    %257 = vmatpush1.msra.mxu0 0.0
    %258 = vmatprep.subr.mxu0 0.0
    %259 = vmatpush1.msra.mxu0 0.0
    %260 = vmatprep.mubr.f32.mxu0 0.0
    %261 = vmatmul.mubr.f32.gmra.mrb[0].mxu0 %v191
    %v262 = vpop.f32.mrb[0].mxu0
    %v263 = vadd.f32 %v182, %v262
    %v264 = vpop.f32.mrb[0].mxu0
    %265 = vmatprep.mubr.f32.mxu0 0.0
    %266 = vmatmul.mubr.f32.gmra.mrb[0].mxu0 %v194
    %v267 = vpop.f32.mrb[0].mxu0
    %v268 = vadd.f32 %v187, %v267
    %v269 = vpop.f32.mrb[0].mxu0
    %270 = vdwg.mxu0
    %v271 = vld [vmem:[%s3] sm:$0x1]
    %v272 = vlaneseq
    %v273 = vshrl.u32 %v272, 7
    %v274 = vsub.s32 0, %v273
    %v275 = vrot.slane %v271, %v274
    %v276 = vadd.f32 %v263, %v275
    %v277 = vadd.f32 %v268, %v275
    %v278 = vmax.f32 %v276, 0.0
    %v279 = vmax.f32 %v277, 0.0
    %v280 = vld [vmem:[#allocation8] sm:$0xff]
    %v281 = vld [vmem:[#allocation8 + $0x8] sm:$0xff]
    %v282 = vld [vmem:[#allocation8 + $0x10] sm:$0xff]
    %v283 = vld [vmem:[#allocation8 + $0x18] sm:$0xff]
    %v284 = vld [vmem:[%s5] sm:$0x1]
    %v286 = vlaneseq
    %v287 = vshrl.u32 %v286, 7
    %v288 = vsub.s32 0, %v287
    %v289 = vrot.slane %v284, %v288
    %v292 = vsel %vm108, %v278, 0
    %v295 = vsel %vm108, %v279, 0
    %297 = vmatprep.subr.mxu0 0.0
    %298 = vmatpush1.msra.mxu0 %v280
    %299 = vmatprep.subr.mxu0 0.0
    %300 = vmatpush1.msra.mxu0 %v281
    %301 = vmatprep.subr.mxu0 0.0
    %302 = vmatpush1.msra.mxu0 %v282
    %303 = vmatprep.subr.mxu0 0.0
    %304 = vmatpush1.msra.mxu0 %v283
    %305 = vmatprep.subr.mxu0 0.0
    %306 = vmatpush1.msra.mxu0 0.0
    %307 = vmatprep.subr.mxu0 0.0
    %308 = vmatpush1.msra.mxu0 0.0
    %309 = vmatprep.subr.mxu0 0.0
    %310 = vmatpush1.msra.mxu0 0.0
    %311 = vmatprep.subr.mxu0 0.0
    %312 = vmatpush1.msra.mxu0 0.0
    %313 = vmatprep.subr.mxu0 0.0
    %314 = vmatpush1.msra.mxu0 0.0
    %315 = vmatprep.subr.mxu0 0.0
    %316 = vmatpush1.msra.mxu0 0.0
    %317 = vmatprep.subr.mxu0 0.0
    %318 = vmatpush1.msra.mxu0 0.0
    %319 = vmatprep.subr.mxu0 0.0
    %320 = vmatpush1.msra.mxu0 0.0
    %321 = vmatprep.subr.mxu0 0.0
    %322 = vmatpush1.msra.mxu0 0.0
    %323 = vmatprep.subr.mxu0 0.0
    %324 = vmatpush1.msra.mxu0 0.0
    %325 = vmatprep.subr.mxu0 0.0
    %326 = vmatpush1.msra.mxu0 0.0
    %327 = vmatprep.subr.mxu0 0.0
    %328 = vmatpush1.msra.mxu0 0.0
    %329 = vmatprep.subr.mxu0 0.0
    %330 = vmatpush1.msra.mxu0 0.0
    %331 = vmatprep.subr.mxu0 0.0
    %332 = vmatpush1.msra.mxu0 0.0
    %333 = vmatprep.subr.mxu0 0.0
    %334 = vmatpush1.msra.mxu0 0.0
    %335 = vmatprep.subr.mxu0 0.0
    %336 = vmatpush1.msra.mxu0 0.0
    %337 = vmatprep.subr.mxu0 0.0
    %338 = vmatpush1.msra.mxu0 0.0
    %339 = vmatprep.subr.mxu0 0.0
    %340 = vmatpush1.msra.mxu0 0.0
    %341 = vmatprep.subr.mxu0 0.0
    %342 = vmatpush1.msra.mxu0 0.0
    %343 = vmatprep.subr.mxu0 0.0
    %344 = vmatpush1.msra.mxu0 0.0
    %345 = vmatprep.subr.mxu0 0.0
    %346 = vmatpush1.msra.mxu0 0.0
    %347 = vmatprep.subr.mxu0 0.0
    %348 = vmatpush1.msra.mxu0 0.0
    %349 = vmatprep.subr.mxu0 0.0
    %350 = vmatpush1.msra.mxu0 0.0
    %351 = vmatprep.subr.mxu0 0.0
    %352 = vmatpush1.msra.mxu0 0.0
    %353 = vmatprep.subr.mxu0 0.0
    %354 = vmatpush1.msra.mxu0 0.0
    %355 = vmatprep.subr.mxu0 0.0
    %356 = vmatpush1.msra.mxu0 0.0
    %357 = vmatprep.subr.mxu0 0.0
    %358 = vmatpush1.msra.mxu0 0.0
    %359 = vmatprep.subr.mxu0 0.0
    %360 = vmatpush1.msra.mxu0 0.0
    %361 = vmatprep.mubr.f32.mxu0 0.0
    %362 = vmatmul.mubr.f32.gmra.mrb[0].mxu0 %v292
    %v363 = vpop.f32.mrb[0].mxu0
    %v364 = vadd.f32 %v289, %v363
    %v365 = vpop.f32.mrb[0].mxu0
    %366 = vmatprep.mubr.f32.mxu0 0.0
    %367 = vmatmul.mubr.f32.gmra.mrb[0].mxu0 %v295
    %v368 = vpop.f32.mrb[0].mxu0
    %v369 = vadd.f32 %v289, %v368
    %v370 = vpop.f32.mrb[0].mxu0
    %371 = vdwg.mxu0
    %v372 = vld [vmem:[%s3 + $0x1] sm:$0x1]
    %374 = vrot.lane.b32.xlu0 %v364, 96
    %v375 = vpop.permute.xlu0 %374
    %vm376 = vcmask 130048
    %v377 = vsel %vm376, %v364, 0
    %v379 = vsel %vm376, %v375, 0
    %381 = vmatprep.subr.mxu0 0.0
    %382 = vmatpush1.xpose.msra.mxu0 %v379
    %383 = vmatprep.subr.mxu0 0.0
    %384 = vmatpush1.xpose.msra.mxu0 0.0
    %385 = vmatprep.subr.mxu0 0.0
    %386 = vmatpush1.xpose.msra.mxu0 0.0
    %387 = vmatprep.subr.mxu0 0.0
    %388 = vmatpush1.xpose.msra.mxu0 0.0
    %389 = vmatprep.subr.mxu0 0.0
    %390 = vmatpush1.xpose.msra.mxu0 0.0
    %391 = vmatprep.subr.mxu0 0.0
    %392 = vmatpush1.xpose.msra.mxu0 0.0
    %393 = vmatprep.subr.mxu0 0.0
    %394 = vmatpush1.xpose.msra.mxu0 0.0
    %395 = vmatprep.subr.mxu0 0.0
    %396 = vmatpush1.xpose.msra.mxu0 0.0
    %397 = vmatprep.subr.mxu0 0.0
    %398 = vmatpush1.xpose.msra.mxu0 0.0
    %399 = vmatprep.subr.mxu0 0.0
    %400 = vmatpush1.xpose.msra.mxu0 0.0
    %401 = vmatprep.subr.mxu0 0.0
    %402 = vmatpush1.xpose.msra.mxu0 0.0
    %403 = vmatprep.subr.mxu0 0.0
    %404 = vmatpush1.xpose.msra.mxu0 0.0
    %405 = vmatprep.subr.mxu0 0.0
    %406 = vmatpush1.xpose.msra.mxu0 0.0
    %407 = vmatprep.subr.mxu0 0.0
    %408 = vmatpush1.xpose.msra.mxu0 0.0
    %409 = vmatprep.subr.mxu0 0.0
    %410 = vmatpush1.xpose.msra.mxu0 0.0
    %411 = vmatprep.subr.mxu0 0.0
    %412 = vmatpush1.xpose.msra.mxu0 0.0
    %413 = vmatprep.subr.mxu0 0.0
    %414 = vmatpush1.xpose.msra.mxu0 0.0
    %415 = vmatprep.subr.mxu0 0.0
    %416 = vmatpush1.xpose.msra.mxu0 0.0
    %417 = vmatprep.subr.mxu0 0.0
    %418 = vmatpush1.xpose.msra.mxu0 0.0
    %419 = vmatprep.subr.mxu0 0.0
    %420 = vmatpush1.xpose.msra.mxu0 0.0
    %421 = vmatprep.subr.mxu0 0.0
    %422 = vmatpush1.xpose.msra.mxu0 0.0
    %423 = vmatprep.subr.mxu0 0.0
    %424 = vmatpush1.xpose.msra.mxu0 0.0
    %425 = vmatprep.subr.mxu0 0.0
    %426 = vmatpush1.xpose.msra.mxu0 0.0
    %427 = vmatprep.subr.mxu0 0.0
    %428 = vmatpush1.xpose.msra.mxu0 0.0
    %429 = vmatprep.subr.mxu0 0.0
    %430 = vmatpush1.xpose.msra.mxu0 0.0
    %431 = vmatprep.subr.mxu0 0.0
    %432 = vmatpush1.xpose.msra.mxu0 0.0
    %433 = vmatprep.subr.mxu0 0.0
    %434 = vmatpush1.xpose.msra.mxu0 0.0
    %435 = vmatprep.subr.mxu0 0.0
    %436 = vmatpush1.xpose.msra.mxu0 0.0
    %437 = vmatprep.subr.mxu0 0.0
    %438 = vmatpush1.xpose.msra.mxu0 0.0
    %439 = vmatprep.subr.mxu0 0.0
    %440 = vmatpush1.xpose.msra.mxu0 0.0
    %441 = vmatprep.subr.mxu0 0.0
    %442 = vmatpush1.xpose.msra.mxu0 0.0
    %443 = vmatprep.subr.mxu0 0.0
    %444 = vmatpush1.xpose.msra.mxu0 0.0
    %445 = vmatprep.mubr.f32.mxu0 0.0
    %446 = vmatmul.mubr.f32.gmra.mrb[0].mxu0 %v377
    %v447 = vpop.f32.mrb[0].mxu0
    %v448 = vadd.f32 0.0, %v447
    %v449 = vpop.f32.mrb[0].mxu0
    %450 = vdwg.mxu0
    %vm451 = vcmask 64512
    %v452 = vsel %vm451, %v448, -inf
    %453 = vmax.xlane.f32.xlu0 %v452
    %v454 = vpop.xlane.xlu0 %453
    %v455 = vsub.f32 %v448, %v454
    %v456 = vmul.f32 %v455, 1.442695
    %v457 = vpow.pop %v456
    %v458 = vsel %vm451, %v457, 0.0
    %459 = vadd.xlane.f32.xlu0 %v458
    %v460 = vpop.xlane.xlu0 %459
    %v461 = vrcp.pop %v460
    %v462 = vmul.f32 %v457, %v461
    %463 = vrot.lane.b32.xlu0 %v364, 64
    %v464 = vpop.permute.xlu0 %463
    %v467 = vsel %vm451, %v462, 0
    %469 = vmatprep.subr.mxu0 0.0
    %470 = vmatpush1.msra.mxu0 %v464
    %471 = vmatprep.subr.mxu0 0.0
    %472 = vmatpush1.msra.mxu0 0.0
    %473 = vmatprep.subr.mxu0 0.0
    %474 = vmatpush1.msra.mxu0 0.0
    %475 = vmatprep.subr.mxu0 0.0
    %476 = vmatpush1.msra.mxu0 0.0
    %477 = vmatprep.subr.mxu0 0.0
    %478 = vmatpush1.msra.mxu0 0.0
    %479 = vmatprep.subr.mxu0 0.0
    %480 = vmatpush1.msra.mxu0 0.0
    %481 = vmatprep.subr.mxu0 0.0
    %482 = vmatpush1.msra.mxu0 0.0
    %483 = vmatprep.subr.mxu0 0.0
    %484 = vmatpush1.msra.mxu0 0.0
    %485 = vmatprep.subr.mxu0 0.0
    %486 = vmatpush1.msra.mxu0 0.0
    %487 = vmatprep.subr.mxu0 0.0
    %488 = vmatpush1.msra.mxu0 0.0
    %489 = vmatprep.subr.mxu0 0.0
    %490 = vmatpush1.msra.mxu0 0.0
    %491 = vmatprep.subr.mxu0 0.0
    %492 = vmatpush1.msra.mxu0 0.0
    %493 = vmatprep.subr.mxu0 0.0
    %494 = vmatpush1.msra.mxu0 0.0
    %495 = vmatprep.subr.mxu0 0.0
    %496 = vmatpush1.msra.mxu0 0.0
    %497 = vmatprep.subr.mxu0 0.0
    %498 = vmatpush1.msra.mxu0 0.0
    %499 = vmatprep.subr.mxu0 0.0
    %500 = vmatpush1.msra.mxu0 0.0
    %501 = vmatprep.subr.mxu0 0.0
    %502 = vmatpush1.msra.mxu0 0.0
    %503 = vmatprep.subr.mxu0 0.0
    %504 = vmatpush1.msra.mxu0 0.0
    %505 = vmatprep.subr.mxu0 0.0
    %506 = vmatpush1.msra.mxu0 0.0
    %507 = vmatprep.subr.mxu0 0.0
    %508 = vmatpush1.msra.mxu0 0.0
    %509 = vmatprep.subr.mxu0 0.0
    %510 = vmatpush1.msra.mxu0 0.0
    %511 = vmatprep.subr.mxu0 0.0
    %512 = vmatpush1.msra.mxu0 0.0
    %513 = vmatprep.subr.mxu0 0.0
    %514 = vmatpush1.msra.mxu0 0.0
    %515 = vmatprep.subr.mxu0 0.0
    %516 = vmatpush1.msra.mxu0 0.0
    %517 = vmatprep.subr.mxu0 0.0
    %518 = vmatpush1.msra.mxu0 0.0
    %519 = vmatprep.subr.mxu0 0.0
    %520 = vmatpush1.msra.mxu0 0.0
    %521 = vmatprep.subr.mxu0 0.0
    %522 = vmatpush1.msra.mxu0 0.0
    %523 = vmatprep.subr.mxu0 0.0
    %524 = vmatpush1.msra.mxu0 0.0
    %525 = vmatprep.subr.mxu0 0.0
    %526 = vmatpush1.msra.mxu0 0.0
    %527 = vmatprep.subr.mxu0 0.0
    %528 = vmatpush1.msra.mxu0 0.0
    %529 = vmatprep.subr.mxu0 0.0
    %530 = vmatpush1.msra.mxu0 0.0
    %531 = vmatprep.subr.mxu0 0.0
    %532 = vmatpush1.msra.mxu0 0.0
    %533 = vmatprep.mubr.f32.mxu0 0.0
    %534 = vmatmul.mubr.f32.gmra.mrb[0].mxu0 %v467
    %v535 = vpop.f32.mrb[0].mxu0
    %v536 = vadd.f32 0.0, %v535
    %v537 = vpop.f32.mrb[0].mxu0
    %538 = vdwg.mxu0
    %v539 = vld [vmem:[#allocation10] sm:$0xff]
    %v540 = vld [vmem:[#allocation10 + $0x8] sm:$0xff]
    %541 = vrot.lane.b32.xlu0 %v364, 112
    %v542 = vpop.permute.xlu0 %541
    %543 = vrot.lane.b32.xlu0 %v364, 80
    %v544 = vpop.permute.xlu0 %543
    %v545 = vsel %vm376, %v542, 0
    %v547 = vsel %vm376, %v544, 0
    %549 = vmatprep.subr.mxu0 0.0
    %550 = vmatpush1.xpose.msra.mxu0 %v547
    %551 = vmatprep.subr.mxu0 0.0
    %552 = vmatpush1.xpose.msra.mxu0 0.0
    %553 = vmatprep.subr.mxu0 0.0
    %554 = vmatpush1.xpose.msra.mxu0 0.0
    %555 = vmatprep.subr.mxu0 0.0
    %556 = vmatpush1.xpose.msra.mxu0 0.0
    %557 = vmatprep.subr.mxu0 0.0
    %558 = vmatpush1.xpose.msra.mxu0 0.0
    %559 = vmatprep.subr.mxu0 0.0
    %560 = vmatpush1.xpose.msra.mxu0 0.0
    %561 = vmatprep.subr.mxu0 0.0
    %562 = vmatpush1.xpose.msra.mxu0 0.0
    %563 = vmatprep.subr.mxu0 0.0
    %564 = vmatpush1.xpose.msra.mxu0 0.0
    %565 = vmatprep.subr.mxu0 0.0
    %566 = vmatpush1.xpose.msra.mxu0 0.0
    %567 = vmatprep.subr.mxu0 0.0
    %568 = vmatpush1.xpose.msra.mxu0 0.0
    %569 = vmatprep.subr.mxu0 0.0
    %570 = vmatpush1.xpose.msra.mxu0 0.0
    %571 = vmatprep.subr.mxu0 0.0
    %572 = vmatpush1.xpose.msra.mxu0 0.0
    %573 = vmatprep.subr.mxu0 0.0
    %574 = vmatpush1.xpose.msra.mxu0 0.0
    %575 = vmatprep.subr.mxu0 0.0
    %576 = vmatpush1.xpose.msra.mxu0 0.0
    %577 = vmatprep.subr.mxu0 0.0
    %578 = vmatpush1.xpose.msra.mxu0 0.0
    %579 = vmatprep.subr.mxu0 0.0
    %580 = vmatpush1.xpose.msra.mxu0 0.0
    %581 = vmatprep.subr.mxu0 0.0
    %582 = vmatpush1.xpose.msra.mxu0 0.0
    %583 = vmatprep.subr.mxu0 0.0
    %584 = vmatpush1.xpose.msra.mxu0 0.0
    %585 = vmatprep.subr.mxu0 0.0
    %586 = vmatpush1.xpose.msra.mxu0 0.0
    %587 = vmatprep.subr.mxu0 0.0
    %588 = vmatpush1.xpose.msra.mxu0 0.0
    %589 = vmatprep.subr.mxu0 0.0
    %590 = vmatpush1.xpose.msra.mxu0 0.0
    %591 = vmatprep.subr.mxu0 0.0
    %592 = vmatpush1.xpose.msra.mxu0 0.0
    %593 = vmatprep.subr.mxu0 0.0
    %594 = vmatpush1.xpose.msra.mxu0 0.0
    %595 = vmatprep.subr.mxu0 0.0
    %596 = vmatpush1.xpose.msra.mxu0 0.0
    %597 = vmatprep.subr.mxu0 0.0
    %598 = vmatpush1.xpose.msra.mxu0 0.0
    %599 = vmatprep.subr.mxu0 0.0
    %600 = vmatpush1.xpose.msra.mxu0 0.0
    %601 = vmatprep.subr.mxu0 0.0
    %602 = vmatpush1.xpose.msra.mxu0 0.0
    %603 = vmatprep.subr.mxu0 0.0
    %604 = vmatpush1.xpose.msra.mxu0 0.0
    %605 = vmatprep.subr.mxu0 0.0
    %606 = vmatpush1.xpose.msra.mxu0 0.0
    %607 = vmatprep.subr.mxu0 0.0
    %608 = vmatpush1.xpose.msra.mxu0 0.0
    %609 = vmatprep.subr.mxu0 0.0
    %610 = vmatpush1.xpose.msra.mxu0 0.0
    %611 = vmatprep.subr.mxu0 0.0
    %612 = vmatpush1.xpose.msra.mxu0 0.0
    %613 = vmatprep.mubr.f32.mxu0 0.0
    %614 = vmatmul.mubr.f32.gmra.mrb[0].mxu0 %v545
    %v615 = vpop.f32.mrb[0].mxu0
    %v616 = vadd.f32 0.0, %v615
    %v617 = vpop.f32.mrb[0].mxu0
    %618 = vdwg.mxu0
    %v619 = vsel %vm451, %v616, -inf
    %620 = vmax.xlane.f32.xlu0 %v619
    %v621 = vpop.xlane.xlu0 %620
    %v622 = vsub.f32 %v616, %v621
    %v623 = vmul.f32 %v622, 1.442695
    %v624 = vpow.pop %v623
    %v625 = vsel %vm451, %v624, 0.0
    %626 = vadd.xlane.f32.xlu0 %v625
    %v627 = vpop.xlane.xlu0 %626
    %v628 = vrcp.pop %v627
    %v629 = vmul.f32 %v624, %v628
    %630 = vrot.lane.b32.xlu0 %v364, 48
    %v631 = vpop.permute.xlu0 %630
    %v634 = vsel %vm451, %v629, 0
    %636 = vmatprep.subr.mxu0 0.0
    %637 = vmatpush1.msra.mxu0 %v631
    %638 = vmatprep.subr.mxu0 0.0
    %639 = vmatpush1.msra.mxu0 0.0
    %640 = vmatprep.subr.mxu0 0.0
    %641 = vmatpush1.msra.mxu0 0.0
    %642 = vmatprep.subr.mxu0 0.0
    %643 = vmatpush1.msra.mxu0 0.0
    %644 = vmatprep.subr.mxu0 0.0
    %645 = vmatpush1.msra.mxu0 0.0
    %646 = vmatprep.subr.mxu0 0.0
    %647 = vmatpush1.msra.mxu0 0.0
    %648 = vmatprep.subr.mxu0 0.0
    %649 = vmatpush1.msra.mxu0 0.0
    %650 = vmatprep.subr.mxu0 0.0
    %651 = vmatpush1.msra.mxu0 0.0
    %652 = vmatprep.subr.mxu0 0.0
    %653 = vmatpush1.msra.mxu0 0.0
    %654 = vmatprep.subr.mxu0 0.0
    %655 = vmatpush1.msra.mxu0 0.0
    %656 = vmatprep.subr.mxu0 0.0
    %657 = vmatpush1.msra.mxu0 0.0
    %658 = vmatprep.subr.mxu0 0.0
    %659 = vmatpush1.msra.mxu0 0.0
    %660 = vmatprep.subr.mxu0 0.0
    %661 = vmatpush1.msra.mxu0 0.0
    %662 = vmatprep.subr.mxu0 0.0
    %663 = vmatpush1.msra.mxu0 0.0
    %664 = vmatprep.subr.mxu0 0.0
    %665 = vmatpush1.msra.mxu0 0.0
    %666 = vmatprep.subr.mxu0 0.0
    %667 = vmatpush1.msra.mxu0 0.0
    %668 = vmatprep.subr.mxu0 0.0
    %669 = vmatpush1.msra.mxu0 0.0
    %670 = vmatprep.subr.mxu0 0.0
    %671 = vmatpush1.msra.mxu0 0.0
    %672 = vmatprep.subr.mxu0 0.0
    %673 = vmatpush1.msra.mxu0 0.0
    %674 = vmatprep.subr.mxu0 0.0
    %675 = vmatpush1.msra.mxu0 0.0
    %676 = vmatprep.subr.mxu0 0.0
    %677 = vmatpush1.msra.mxu0 0.0
    %678 = vmatprep.subr.mxu0 0.0
    %679 = vmatpush1.msra.mxu0 0.0
    %680 = vmatprep.subr.mxu0 0.0
    %681 = vmatpush1.msra.mxu0 0.0
    %682 = vmatprep.subr.mxu0 0.0
    %683 = vmatpush1.msra.mxu0 0.0
    %684 = vmatprep.subr.mxu0 0.0
    %685 = vmatpush1.msra.mxu0 0.0
    %686 = vmatprep.subr.mxu0 0.0
    %687 = vmatpush1.msra.mxu0 0.0
    %688 = vmatprep.subr.mxu0 0.0
    %689 = vmatpush1.msra.mxu0 0.0
    %690 = vmatprep.subr.mxu0 0.0
    %691 = vmatpush1.msra.mxu0 0.0
    %692 = vmatprep.subr.mxu0 0.0
    %693 = vmatpush1.msra.mxu0 0.0
    %694 = vmatprep.subr.mxu0 0.0
    %695 = vmatpush1.msra.mxu0 0.0
    %696 = vmatprep.subr.mxu0 0.0
    %697 = vmatpush1.msra.mxu0 0.0
    %698 = vmatprep.subr.mxu0 0.0
    %699 = vmatpush1.msra.mxu0 0.0
    %700 = vmatprep.mubr.f32.mxu0 0.0
    %701 = vmatmul.mubr.f32.gmra.mrb[0].mxu0 %v634
    %v702 = vpop.f32.mrb[0].mxu0
    %v703 = vadd.f32 0.0, %v702
    %v704 = vpop.f32.mrb[0].mxu0
    %705 = vdwg.mxu0
    %s706 = scalar_lea.vmem [#allocation10], 16
    %v707 = vld [vmem:[%s706] sm:$0xff]
    %v708 = vld [vmem:[%s706 + $0x8] sm:$0xff]
    %v710 = vsel %vm376, %v703, 0
    %712 = vmatprep.subr.mxu0 0.0
    %713 = vmatpush1.msra.mxu0 %v707
    %714 = vmatprep.subr.mxu0 0.0
    %715 = vmatpush1.msra.mxu0 %v708
    %716 = vmatprep.subr.mxu0 0.0
    %717 = vmatpush1.msra.mxu0 0.0
    %718 = vmatprep.subr.mxu0 0.0
    %719 = vmatpush1.msra.mxu0 0.0
    %720 = vmatprep.subr.mxu0 0.0
    %721 = vmatpush1.msra.mxu0 0.0
    %722 = vmatprep.subr.mxu0 0.0
    %723 = vmatpush1.msra.mxu0 0.0
    %724 = vmatprep.subr.mxu0 0.0
    %725 = vmatpush1.msra.mxu0 0.0
    %726 = vmatprep.subr.mxu0 0.0
    %727 = vmatpush1.msra.mxu0 0.0
    %728 = vmatprep.subr.mxu0 0.0
    %729 = vmatpush1.msra.mxu0 0.0
    %730 = vmatprep.subr.mxu0 0.0
    %731 = vmatpush1.msra.mxu0 0.0
    %732 = vmatprep.subr.mxu0 0.0
    %733 = vmatpush1.msra.mxu0 0.0
    %734 = vmatprep.subr.mxu0 0.0
    %735 = vmatpush1.msra.mxu0 0.0
    %736 = vmatprep.subr.mxu0 0.0
    %737 = vmatpush1.msra.mxu0 0.0
    %738 = vmatprep.subr.mxu0 0.0
    %739 = vmatpush1.msra.mxu0 0.0
    %740 = vmatprep.subr.mxu0 0.0
    %741 = vmatpush1.msra.mxu0 0.0
    %742 = vmatprep.subr.mxu0 0.0
    %743 = vmatpush1.msra.mxu0 0.0
    %744 = vmatprep.subr.mxu0 0.0
    %745 = vmatpush1.msra.mxu0 0.0
    %746 = vmatprep.subr.mxu0 0.0
    %747 = vmatpush1.msra.mxu0 0.0
    %748 = vmatprep.subr.mxu0 0.0
    %749 = vmatpush1.msra.mxu0 0.0
    %750 = vmatprep.subr.mxu0 0.0
    %751 = vmatpush1.msra.mxu0 0.0
    %752 = vmatprep.subr.mxu0 0.0
    %753 = vmatpush1.msra.mxu0 0.0
    %754 = vmatprep.subr.mxu0 0.0
    %755 = vmatpush1.msra.mxu0 0.0
    %756 = vmatprep.subr.mxu0 0.0
    %757 = vmatpush1.msra.mxu0 0.0
    %758 = vmatprep.subr.mxu0 0.0
    %759 = vmatpush1.msra.mxu0 0.0
    %760 = vmatprep.subr.mxu0 0.0
    %761 = vmatpush1.msra.mxu0 0.0
    %762 = vmatprep.subr.mxu0 0.0
    %763 = vmatpush1.msra.mxu0 0.0
    %764 = vmatprep.subr.mxu0 0.0
    %765 = vmatpush1.msra.mxu0 0.0
    %766 = vmatprep.subr.mxu0 0.0
    %767 = vmatpush1.msra.mxu0 0.0
    %768 = vmatprep.subr.mxu0 0.0
    %769 = vmatpush1.msra.mxu0 0.0
    %770 = vmatprep.subr.mxu0 0.0
    %771 = vmatpush1.msra.mxu0 0.0
    %772 = vmatprep.subr.mxu0 0.0
    %773 = vmatpush1.msra.mxu0 0.0
    %774 = vmatprep.subr.mxu0 0.0
    %775 = vmatpush1.msra.mxu0 0.0
    %776 = vmatprep.mubr.f32.mxu0 0.0
    %777 = vmatmul.mubr.f32.gmra.mrb[0].mxu0 %v710
    %v778 = vpop.f32.mrb[0].mxu0
    %v779 = vadd.f32 0.0, %v778
    %v780 = vpop.f32.mrb[0].mxu0
    %781 = vdwg.mxu0
    %v783 = vsel %vm376, %v536, 0
    %785 = vmatprep.subr.mxu0 0.0
    %786 = vmatpush1.msra.mxu0 %v539
    %787 = vmatprep.subr.mxu0 0.0
    %788 = vmatpush1.msra.mxu0 %v540
    %789 = vmatprep.subr.mxu0 0.0
    %790 = vmatpush1.msra.mxu0 0.0
    %791 = vmatprep.subr.mxu0 0.0
    %792 = vmatpush1.msra.mxu0 0.0
    %793 = vmatprep.subr.mxu0 0.0
    %794 = vmatpush1.msra.mxu0 0.0
    %795 = vmatprep.subr.mxu0 0.0
    %796 = vmatpush1.msra.mxu0 0.0
    %797 = vmatprep.subr.mxu0 0.0
    %798 = vmatpush1.msra.mxu0 0.0
    %799 = vmatprep.subr.mxu0 0.0
    %800 = vmatpush1.msra.mxu0 0.0
    %801 = vmatprep.subr.mxu0 0.0
    %802 = vmatpush1.msra.mxu0 0.0
    %803 = vmatprep.subr.mxu0 0.0
    %804 = vmatpush1.msra.mxu0 0.0
    %805 = vmatprep.subr.mxu0 0.0
    %806 = vmatpush1.msra.mxu0 0.0
    %807 = vmatprep.subr.mxu0 0.0
    %808 = vmatpush1.msra.mxu0 0.0
    %809 = vmatprep.subr.mxu0 0.0
    %810 = vmatpush1.msra.mxu0 0.0
    %811 = vmatprep.subr.mxu0 0.0
    %812 = vmatpush1.msra.mxu0 0.0
    %813 = vmatprep.subr.mxu0 0.0
    %814 = vmatpush1.msra.mxu0 0.0
    %815 = vmatprep.subr.mxu0 0.0
    %816 = vmatpush1.msra.mxu0 0.0
    %817 = vmatprep.subr.mxu0 0.0
    %818 = vmatpush1.msra.mxu0 0.0
    %819 = vmatprep.subr.mxu0 0.0
    %820 = vmatpush1.msra.mxu0 0.0
    %821 = vmatprep.subr.mxu0 0.0
    %822 = vmatpush1.msra.mxu0 0.0
    %823 = vmatprep.subr.mxu0 0.0
    %824 = vmatpush1.msra.mxu0 0.0
    %825 = vmatprep.subr.mxu0 0.0
    %826 = vmatpush1.msra.mxu0 0.0
    %827 = vmatprep.subr.mxu0 0.0
    %828 = vmatpush1.msra.mxu0 0.0
    %829 = vmatprep.subr.mxu0 0.0
    %830 = vmatpush1.msra.mxu0 0.0
    %831 = vmatprep.subr.mxu0 0.0
    %832 = vmatpush1.msra.mxu0 0.0
    %833 = vmatprep.subr.mxu0 0.0
    %834 = vmatpush1.msra.mxu0 0.0
    %835 = vmatprep.subr.mxu0 0.0
    %836 = vmatpush1.msra.mxu0 0.0
    %837 = vmatprep.subr.mxu0 0.0
    %838 = vmatpush1.msra.mxu0 0.0
    %839 = vmatprep.subr.mxu0 0.0
    %840 = vmatpush1.msra.mxu0 0.0
    %841 = vmatprep.subr.mxu0 0.0
    %842 = vmatpush1.msra.mxu0 0.0
    %843 = vmatprep.subr.mxu0 0.0
    %844 = vmatpush1.msra.mxu0 0.0
    %845 = vmatprep.subr.mxu0 0.0
    %846 = vmatpush1.msra.mxu0 0.0
    %847 = vmatprep.subr.mxu0 0.0
    %848 = vmatpush1.msra.mxu0 0.0
    %849 = vmatprep.mubr.f32.mxu0 0.0
    %850 = vmatmul.mubr.f32.gmra.mrb[0].mxu0 %v783
    %v851 = vpop.f32.mrb[0].mxu0
    %v852 = vadd.f32 %v779, %v851
    %v853 = vpop.f32.mrb[0].mxu0
    %854 = vdwg.mxu0
    %v855 = vlaneseq
    %v856 = vshrl.u32 %v855, 7
    %v857 = vsub.s32 0, %v856
    %v858 = vrot.slane %v372, %v857
    %v859 = vadd.f32 %v852, %v858
    %v861 = vsel %vm108, %v859, 0
    %863 = vmatprep.subr.mxu0 0.0
    %864 = vmatpush1.xpose.msra.mxu0 %v861
    %865 = vmatprep.subr.mxu0 0.0
    %866 = vmatpush1.xpose.msra.mxu0 0.0
    %867 = vmatprep.subr.mxu0 0.0
    %868 = vmatpush1.xpose.msra.mxu0 0.0
    %869 = vmatprep.subr.mxu0 0.0
    %870 = vmatpush1.xpose.msra.mxu0 0.0
    %871 = vmatprep.subr.mxu0 0.0
    %872 = vmatpush1.xpose.msra.mxu0 0.0
    %873 = vmatprep.subr.mxu0 0.0
    %874 = vmatpush1.xpose.msra.mxu0 0.0
    %875 = vmatprep.subr.mxu0 0.0
    %876 = vmatpush1.xpose.msra.mxu0 0.0
    %877 = vmatprep.subr.mxu0 0.0
    %878 = vmatpush1.xpose.msra.mxu0 0.0
    %879 = vmatprep.subr.mxu0 0.0
    %880 = vmatpush1.xpose.msra.mxu0 0.0
    %881 = vmatprep.subr.mxu0 0.0
    %882 = vmatpush1.xpose.msra.mxu0 0.0
    %883 = vmatprep.subr.mxu0 0.0
    %884 = vmatpush1.xpose.msra.mxu0 0.0
    %885 = vmatprep.subr.mxu0 0.0
    %886 = vmatpush1.xpose.msra.mxu0 0.0
    %887 = vmatprep.subr.mxu0 0.0
    %888 = vmatpush1.xpose.msra.mxu0 0.0
    %889 = vmatprep.subr.mxu0 0.0
    %890 = vmatpush1.xpose.msra.mxu0 0.0
    %891 = vmatprep.subr.mxu0 0.0
    %892 = vmatpush1.xpose.msra.mxu0 0.0
    %893 = vmatprep.subr.mxu0 0.0
    %894 = vmatpush1.xpose.msra.mxu0 0.0
    %895 = vmatprep.subr.mxu0 0.0
    %896 = vmatpush1.xpose.msra.mxu0 0.0
    %897 = vmatprep.subr.mxu0 0.0
    %898 = vmatpush1.xpose.msra.mxu0 0.0
    %899 = vmatprep.subr.mxu0 0.0
    %900 = vmatpush1.xpose.msra.mxu0 0.0
    %901 = vmatprep.subr.mxu0 0.0
    %902 = vmatpush1.xpose.msra.mxu0 0.0
    %903 = vmatprep.subr.mxu0 0.0
    %904 = vmatpush1.xpose.msra.mxu0 0.0
    %905 = vmatprep.subr.mxu0 0.0
    %906 = vmatpush1.xpose.msra.mxu0 0.0
    %907 = vmatprep.subr.mxu0 0.0
    %908 = vmatpush1.xpose.msra.mxu0 0.0
    %909 = vmatprep.subr.mxu0 0.0
    %910 = vmatpush1.xpose.msra.mxu0 0.0
    %911 = vmatprep.subr.mxu0 0.0
    %912 = vmatpush1.xpose.msra.mxu0 0.0
    %913 = vmatprep.subr.mxu0 0.0
    %914 = vmatpush1.xpose.msra.mxu0 0.0
    %915 = vmatprep.subr.mxu0 0.0
    %916 = vmatpush1.xpose.msra.mxu0 0.0
    %917 = vmatprep.subr.mxu0 0.0
    %918 = vmatpush1.xpose.msra.mxu0 0.0
    %919 = vmatprep.subr.mxu0 0.0
    %920 = vmatpush1.xpose.msra.mxu0 0.0
    %921 = vmatprep.subr.mxu0 0.0
    %922 = vmatpush1.xpose.msra.mxu0 0.0
    %923 = vmatprep.subr.mxu0 0.0
    %924 = vmatpush1.xpose.msra.mxu0 0.0
    %925 = vmatprep.subr.mxu0 0.0
    %926 = vmatpush1.xpose.msra.mxu0 0.0
    %927 = vmatprep.mubr.f32.mxu0 0.0
    %928 = vmatmul.mubr.f32.gmra.mrb[0].mxu0 %v861
    %v929 = vpop.f32.mrb[0].mxu0
    %v930 = vadd.f32 0.0, %v929
    %v931 = vpop.f32.mrb[0].mxu0
    %932 = vdwg.mxu0
    %v933 = vtanh.pop %v930
    %v934 = vmax.f32 %v933, 0.0
    %v935 = vsel %vm451, %v934, 0.0
    %936 = vadd.xlane.f32.xlu0 %v935
    %v937 = vpop.xlane.xlu0 %936
    %v938 = vadd.f32 %v937, 1e-06
    %v939 = vrcp.pop %v938
    %v940 = vmul.f32 %v934, %v939
    %941 = vst.msk [vmem:[#allocation11] sm:$0xff] %vm451, %v940
    %s942 = scalar_lea.vmem [#allocation11], 16
    %943 = vst.msk [vmem:[%s942] sm:$0xff] %vm451, %v934
    %s944 = scalar_lea.vmem [#allocation11], 32
    %945 = vst.msk [vmem:[%s944] sm:$0xff] %vm451, %v930
    %947 = vrot.lane.b32.xlu0 %v369, 96
    %v948 = vpop.permute.xlu0 %947
    %v949 = vsel %vm376, %v369, 0
    %v951 = vsel %vm376, %v948, 0
    %953 = vmatprep.subr.mxu0 0.0
    %954 = vmatpush1.xpose.msra.mxu0 %v951
    %955 = vmatprep.subr.mxu0 0.0
    %956 = vmatpush1.xpose.msra.mxu0 0.0
    %957 = vmatprep.subr.mxu0 0.0
    %958 = vmatpush1.xpose.msra.mxu0 0.0
    %959 = vmatprep.subr.mxu0 0.0
    %960 = vmatpush1.xpose.msra.mxu0 0.0
    %961 = vmatprep.subr.mxu0 0.0
    %962 = vmatpush1.xpose.msra.mxu0 0.0
    %963 = vmatprep.subr.mxu0 0.0
    %964 = vmatpush1.xpose.msra.mxu0 0.0
    %965 = vmatprep.subr.mxu0 0.0
    %966 = vmatpush1.xpose.msra.mxu0 0.0
    %967 = vmatprep.subr.mxu0 0.0
    %968 = vmatpush1.xpose.msra.mxu0 0.0
    %969 = vmatprep.subr.mxu0 0.0
    %970 = vmatpush1.xpose.msra.mxu0 0.0
    %971 = vmatprep.subr.mxu0 0.0
    %972 = vmatpush1.xpose.msra.mxu0 0.0
    %973 = vmatprep.subr.mxu0 0.0
    %974 = vmatpush1.xpose.msra.mxu0 0.0
    %975 = vmatprep.subr.mxu0 0.0
    %976 = vmatpush1.xpose.msra.mxu0 0.0
    %977 = vmatprep.subr.mxu0 0.0
    %978 = vmatpush1.xpose.msra.mxu0 0.0
    %979 = vmatprep.subr.mxu0 0.0
    %980 = vmatpush1.xpose.msra.mxu0 0.0
    %981 = vmatprep.subr.mxu0 0.0
    %982 = vmatpush1.xpose.msra.mxu0 0.0
    %983 = vmatprep.subr.mxu0 0.0
    %984 = vmatpush1.xpose.msra.mxu0 0.0
    %985 = vmatprep.subr.mxu0 0.0
    %986 = vmatpush1.xpose.msra.mxu0 0.0
    %987 = vmatprep.subr.mxu0 0.0
    %988 = vmatpush1.xpose.msra.mxu0 0.0
    %989 = vmatprep.subr.mxu0 0.0
    %990 = vmatpush1.xpose.msra.mxu0 0.0
    %991 = vmatprep.subr.mxu0 0.0
    %992 = vmatpush1.xpose.msra.mxu0 0.0
    %993 = vmatprep.subr.mxu0 0.0
    %994 = vmatpush1.xpose.msra.mxu0 0.0
    %995 = vmatprep.subr.mxu0 0.0
    %996 = vmatpush1.xpose.msra.mxu0 0.0
    %997 = vmatprep.subr.mxu0 0.0
    %998 = vmatpush1.xpose.msra.mxu0 0.0
    %999 = vmatprep.subr.mxu0 0.0
    %1000 = vmatpush1.xpose.msra.mxu0 0.0
    %1001 = vmatprep.subr.mxu0 0.0
    %1002 = vmatpush1.xpose.msra.mxu0 0.0
    %1003 = vmatprep.subr.mxu0 0.0
    %1004 = vmatpush1.xpose.msra.mxu0 0.0
    %1005 = vmatprep.subr.mxu0 0.0
    %1006 = vmatpush1.xpose.msra.mxu0 0.0
    %1007 = vmatprep.subr.mxu0 0.0
    %1008 = vmatpush1.xpose.msra.mxu0 0.0
    %1009 = vmatprep.subr.mxu0 0.0
    %1010 = vmatpush1.xpose.msra.mxu0 0.0
    %1011 = vmatprep.subr.mxu0 0.0
    %1012 = vmatpush1.xpose.msra.mxu0 0.0
    %1013 = vmatprep.subr.mxu0 0.0
    %1014 = vmatpush1.xpose.msra.mxu0 0.0
    %1015 = vmatprep.subr.mxu0 0.0
    %1016 = vmatpush1.xpose.msra.mxu0 0.0
    %1017 = vmatprep.mubr.f32.mxu0 0.0
    %1018 = vmatmul.mubr.f32.gmra.mrb[0].mxu0 %v949
    %v1019 = vpop.f32.mrb[0].mxu0
    %v1020 = vadd.f32 0.0, %v1019
    %v1021 = vpop.f32.mrb[0].mxu0
    %1022 = vdwg.mxu0
    %v1023 = vsel %vm451, %v1020, -inf
    %1024 = vmax.xlane.f32.xlu0 %v1023
    %v1025 = vpop.xlane.xlu0 %1024
    %v1026 = vsub.f32 %v1020, %v1025
    %v1027 = vmul.f32 %v1026, 1.442695
    %v1028 = vpow.pop %v1027
    %v1029 = vsel %vm451, %v1028, 0.0
    %1030 = vadd.xlane.f32.xlu0 %v1029
    %v1031 = vpop.xlane.xlu0 %1030
    %v1032 = vrcp.pop %v1031
    %v1033 = vmul.f32 %v1028, %v1032
    %1034 = vrot.lane.b32.xlu0 %v369, 64
    %v1035 = vpop.permute.xlu0 %1034
    %v1038 = vsel %vm451, %v1033, 0
    %1040 = vmatprep.subr.mxu0 0.0
    %1041 = vmatpush1.msra.mxu0 %v1035
    %1042 = vmatprep.subr.mxu0 0.0
    %1043 = vmatpush1.msra.mxu0 0.0
    %1044 = vmatprep.subr.mxu0 0.0
    %1045 = vmatpush1.msra.mxu0 0.0
    %1046 = vmatprep.subr.mxu0 0.0
    %1047 = vmatpush1.msra.mxu0 0.0
    %1048 = vmatprep.subr.mxu0 0.0
    %1049 = vmatpush1.msra.mxu0 0.0
    %1050 = vmatprep.subr.mxu0 0.0
    %1051 = vmatpush1.msra.mxu0 0.0
    %1052 = vmatprep.subr.mxu0 0.0
    %1053 = vmatpush1.msra.mxu0 0.0
    %1054 = vmatprep.subr.mxu0 0.0
    %1055 = vmatpush1.msra.mxu0 0.0
    %1056 = vmatprep.subr.mxu0 0.0
    %1057 = vmatpush1.msra.mxu0 0.0
    %1058 = vmatprep.subr.mxu0 0.0
    %1059 = vmatpush1.msra.mxu0 0.0
    %1060 = vmatprep.subr.mxu0 0.0
    %1061 = vmatpush1.msra.mxu0 0.0
    %1062 = vmatprep.subr.mxu0 0.0
    %1063 = vmatpush1.msra.mxu0 0.0
    %1064 = vmatprep.subr.mxu0 0.0
    %1065 = vmatpush1.msra.mxu0 0.0
    %1066 = vmatprep.subr.mxu0 0.0
    %1067 = vmatpush1.msra.mxu0 0.0
    %1068 = vmatprep.subr.mxu0 0.0
    %1069 = vmatpush1.msra.mxu0 0.0
    %1070 = vmatprep.subr.mxu0 0.0
    %1071 = vmatpush1.msra.mxu0 0.0
    %1072 = vmatprep.subr.mxu0 0.0
    %1073 = vmatpush1.msra.mxu0 0.0
    %1074 = vmatprep.subr.mxu0 0.0
    %1075 = vmatpush1.msra.mxu0 0.0
    %1076 = vmatprep.subr.mxu0 0.0
    %1077 = vmatpush1.msra.mxu0 0.0
    %1078 = vmatprep.subr.mxu0 0.0
    %1079 = vmatpush1.msra.mxu0 0.0
    %1080 = vmatprep.subr.mxu0 0.0
    %1081 = vmatpush1.msra.mxu0 0.0
    %1082 = vmatprep.subr.mxu0 0.0
    %1083 = vmatpush1.msra.mxu0 0.0
    %1084 = vmatprep.subr.mxu0 0.0
    %1085 = vmatpush1.msra.mxu0 0.0
    %1086 = vmatprep.subr.mxu0 0.0
    %1087 = vmatpush1.msra.mxu0 0.0
    %1088 = vmatprep.subr.mxu0 0.0
    %1089 = vmatpush1.msra.mxu0 0.0
    %1090 = vmatprep.subr.mxu0 0.0
    %1091 = vmatpush1.msra.mxu0 0.0
    %1092 = vmatprep.subr.mxu0 0.0
    %1093 = vmatpush1.msra.mxu0 0.0
    %1094 = vmatprep.subr.mxu0 0.0
    %1095 = vmatpush1.msra.mxu0 0.0
    %1096 = vmatprep.subr.mxu0 0.0
    %1097 = vmatpush1.msra.mxu0 0.0
    %1098 = vmatprep.subr.mxu0 0.0
    %1099 = vmatpush1.msra.mxu0 0.0
    %1100 = vmatprep.subr.mxu0 0.0
    %1101 = vmatpush1.msra.mxu0 0.0
    %1102 = vmatprep.subr.mxu0 0.0
    %1103 = vmatpush1.msra.mxu0 0.0
    %1104 = vmatprep.mubr.f32.mxu0 0.0
    %1105 = vmatmul.mubr.f32.gmra.mrb[0].mxu0 %v1038
    %v1106 = vpop.f32.mrb[0].mxu0
    %v1107 = vadd.f32 0.0, %v1106
    %v1108 = vpop.f32.mrb[0].mxu0
    %1109 = vdwg.mxu0
    %v1110 = vld [vmem:[#allocation10] sm:$0xff]
    %v1111 = vld [vmem:[#allocation10 + $0x8] sm:$0xff]
    %1112 = vrot.lane.b32.xlu0 %v369, 112
    %v1113 = vpop.permute.xlu0 %1112
    %1114 = vrot.lane.b32.xlu0 %v369, 80
    %v1115 = vpop.permute.xlu0 %1114
    %v1116 = vsel %vm376, %v1113, 0
    %v1118 = vsel %vm376, %v1115, 0
    %1120 = vmatprep.subr.mxu0 0.0
    %1121 = vmatpush1.xpose.msra.mxu0 %v1118
    %1122 = vmatprep.subr.mxu0 0.0
    %1123 = vmatpush1.xpose.msra.mxu0 0.0
    %1124 = vmatprep.subr.mxu0 0.0
    %1125 = vmatpush1.xpose.msra.mxu0 0.0
    %1126 = vmatprep.subr.mxu0 0.0
    %1127 = vmatpush1.xpose.msra.mxu0 0.0
    %1128 = vmatprep.subr.mxu0 0.0
    %1129 = vmatpush1.xpose.msra.mxu0 0.0
    %1130 = vmatprep.subr.mxu0 0.0
    %1131 = vmatpush1.xpose.msra.mxu0 0.0
    %1132 = vmatprep.subr.mxu0 0.0
    %1133 = vmatpush1.xpose.msra.mxu0 0.0
    %1134 = vmatprep.subr.mxu0 0.0
    %1135 = vmatpush1.xpose.msra.mxu0 0.0
    %1136 = vmatprep.subr.mxu0 0.0
    %1137 = vmatpush1.xpose.msra.mxu0 0.0
    %1138 = vmatprep.subr.mxu0 0.0
    %1139 = vmatpush1.xpose.msra.mxu0 0.0
    %1140 = vmatprep.subr.mxu0 0.0
    %1141 = vmatpush1.xpose.msra.mxu0 0.0
    %1142 = vmatprep.subr.mxu0 0.0
    %1143 = vmatpush1.xpose.msra.mxu0 0.0
    %1144 = vmatprep.subr.mxu0 0.0
    %1145 = vmatpush1.xpose.msra.mxu0 0.0
    %1146 = vmatprep.subr.mxu0 0.0
    %1147 = vmatpush1.xpose.msra.mxu0 0.0
    %1148 = vmatprep.subr.mxu0 0.0
    %1149 = vmatpush1.xpose.msra.mxu0 0.0
    %1150 = vmatprep.subr.mxu0 0.0
    %1151 = vmatpush1.xpose.msra.mxu0 0.0
    %1152 = vmatprep.subr.mxu0 0.0
    %1153 = vmatpush1.xpose.msra.mxu0 0.0
    %1154 = vmatprep.subr.mxu0 0.0
    %1155 = vmatpush1.xpose.msra.mxu0 0.0
    %1156 = vmatprep.subr.mxu0 0.0
    %1157 = vmatpush1.xpose.msra.mxu0 0.0
    %1158 = vmatprep.subr.mxu0 0.0
    %1159 = vmatpush1.xpose.msra.mxu0 0.0
    %1160 = vmatprep.subr.mxu0 0.0
    %1161 = vmatpush1.xpose.msra.mxu0 0.0
    %1162 = vmatprep.subr.mxu0 0.0
    %1163 = vmatpush1.xpose.msra.mxu0 0.0
    %1164 = vmatprep.subr.mxu0 0.0
    %1165 = vmatpush1.xpose.msra.mxu0 0.0
    %1166 = vmatprep.subr.mxu0 0.0
    %1167 = vmatpush1.xpose.msra.mxu0 0.0
    %1168 = vmatprep.subr.mxu0 0.0
    %1169 = vmatpush1.xpose.msra.mxu0 0.0
    %1170 = vmatprep.subr.mxu0 0.0
    %1171 = vmatpush1.xpose.msra.mxu0 0.0
    %1172 = vmatprep.subr.mxu0 0.0
    %1173 = vmatpush1.xpose.msra.mxu0 0.0
    %1174 = vmatprep.subr.mxu0 0.0
    %1175 = vmatpush1.xpose.msra.mxu0 0.0
    %1176 = vmatprep.subr.mxu0 0.0
    %1177 = vmatpush1.xpose.msra.mxu0 0.0
    %1178 = vmatprep.subr.mxu0 0.0
    %1179 = vmatpush1.xpose.msra.mxu0 0.0
    %1180 = vmatprep.subr.mxu0 0.0
    %1181 = vmatpush1.xpose.msra.mxu0 0.0
    %1182 = vmatprep.subr.mxu0 0.0
    %1183 = vmatpush1.xpose.msra.mxu0 0.0
    %1184 = vmatprep.mubr.f32.mxu0 0.0
    %1185 = vmatmul.mubr.f32.gmra.mrb[0].mxu0 %v1116
    %v1186 = vpop.f32.mrb[0].mxu0
    %v1187 = vadd.f32 0.0, %v1186
    %v1188 = vpop.f32.mrb[0].mxu0
    %1189 = vdwg.mxu0
    %v1190 = vsel %vm451, %v1187, -inf
    %1191 = vmax.xlane.f32.xlu0 %v1190
    %v1192 = vpop.xlane.xlu0 %1191
    %v1193 = vsub.f32 %v1187, %v1192
    %v1194 = vmul.f32 %v1193, 1.442695
    %v1195 = vpow.pop %v1194
    %v1196 = vsel %vm451, %v1195, 0.0
    %1197 = vadd.xlane.f32.xlu0 %v1196
    %v1198 = vpop.xlane.xlu0 %1197
    %v1199 = vrcp.pop %v1198
    %v1200 = vmul.f32 %v1195, %v1199
    %1201 = vrot.lane.b32.xlu0 %v369, 48
    %v1202 = vpop.permute.xlu0 %1201
    %v1205 = vsel %vm451, %v1200, 0
    %1207 = vmatprep.subr.mxu0 0.0
    %1208 = vmatpush1.msra.mxu0 %v1202
    %1209 = vmatprep.subr.mxu0 0.0
    %1210 = vmatpush1.msra.mxu0 0.0
    %1211 = vmatprep.subr.mxu0 0.0
    %1212 = vmatpush1.msra.mxu0 0.0
    %1213 = vmatprep.subr.mxu0 0.0
    %1214 = vmatpush1.msra.mxu0 0.0
    %1215 = vmatprep.subr.mxu0 0.0
    %1216 = vmatpush1.msra.mxu0 0.0
    %1217 = vmatprep.subr.mxu0 0.0
    %1218 = vmatpush1.msra.mxu0 0.0
    %1219 = vmatprep.subr.mxu0 0.0
    %1220 = vmatpush1.msra.mxu0 0.0
    %1221 = vmatprep.subr.mxu0 0.0
    %1222 = vmatpush1.msra.mxu0 0.0
    %1223 = vmatprep.subr.mxu0 0.0
    %1224 = vmatpush1.msra.mxu0 0.0
    %1225 = vmatprep.subr.mxu0 0.0
    %1226 = vmatpush1.msra.mxu0 0.0
    %1227 = vmatprep.subr.mxu0 0.0
    %1228 = vmatpush1.msra.mxu0 0.0
    %1229 = vmatprep.subr.mxu0 0.0
    %1230 = vmatpush1.msra.mxu0 0.0
    %1231 = vmatprep.subr.mxu0 0.0
    %1232 = vmatpush1.msra.mxu0 0.0
    %1233 = vmatprep.subr.mxu0 0.0
    %1234 = vmatpush1.msra.mxu0 0.0
    %1235 = vmatprep.subr.mxu0 0.0
    %1236 = vmatpush1.msra.mxu0 0.0
    %1237 = vmatprep.subr.mxu0 0.0
    %1238 = vmatpush1.msra.mxu0 0.0
    %1239 = vmatprep.subr.mxu0 0.0
    %1240 = vmatpush1.msra.mxu0 0.0
    %1241 = vmatprep.subr.mxu0 0.0
    %1242 = vmatpush1.msra.mxu0 0.0
    %1243 = vmatprep.subr.mxu0 0.0
    %1244 = vmatpush1.msra.mxu0 0.0
    %1245 = vmatprep.subr.mxu0 0.0
    %1246 = vmatpush1.msra.mxu0 0.0
    %1247 = vmatprep.subr.mxu0 0.0
    %1248 = vmatpush1.msra.mxu0 0.0
    %1249 = vmatprep.subr.mxu0 0.0
    %1250 = vmatpush1.msra.mxu0 0.0
    %1251 = vmatprep.subr.mxu0 0.0
    %1252 = vmatpush1.msra.mxu0 0.0
    %1253 = vmatprep.subr.mxu0 0.0
    %1254 = vmatpush1.msra.mxu0 0.0
    %1255 = vmatprep.subr.mxu0 0.0
    %1256 = vmatpush1.msra.mxu0 0.0
    %1257 = vmatprep.subr.mxu0 0.0
    %1258 = vmatpush1.msra.mxu0 0.0
    %1259 = vmatprep.subr.mxu0 0.0
    %1260 = vmatpush1.msra.mxu0 0.0
    %1261 = vmatprep.subr.mxu0 0.0
    %1262 = vmatpush1.msra.mxu0 0.0
    %1263 = vmatprep.subr.mxu0 0.0
    %1264 = vmatpush1.msra.mxu0 0.0
    %1265 = vmatprep.subr.mxu0 0.0
    %1266 = vmatpush1.msra.mxu0 0.0
    %1267 = vmatprep.subr.mxu0 0.0
    %1268 = vmatpush1.msra.mxu0 0.0
    %1269 = vmatprep.subr.mxu0 0.0
    %1270 = vmatpush1.msra.mxu0 0.0
    %1271 = vmatprep.mubr.f32.mxu0 0.0
    %1272 = vmatmul.mubr.f32.gmra.mrb[0].mxu0 %v1205
    %v1273 = vpop.f32.mrb[0].mxu0
    %v1274 = vadd.f32 0.0, %v1273
    %v1275 = vpop.f32.mrb[0].mxu0
    %1276 = vdwg.mxu0
    %v1277 = vld [vmem:[%s706] sm:$0xff]
    %v1278 = vld [vmem:[%s706 + $0x8] sm:$0xff]
    %v1280 = vsel %vm376, %v1274, 0
    %1282 = vmatprep.subr.mxu0 0.0
    %1283 = vmatpush1.msra.mxu0 %v1277
    %1284 = vmatprep.subr.mxu0 0.0
    %1285 = vmatpush1.msra.mxu0 %v1278
    %1286 = vmatprep.subr.mxu0 0.0
    %1287 = vmatpush1.msra.mxu0 0.0
    %1288 = vmatprep.subr.mxu0 0.0
    %1289 = vmatpush1.msra.mxu0 0.0
    %1290 = vmatprep.subr.mxu0 0.0
    %1291 = vmatpush1.msra.mxu0 0.0
    %1292 = vmatprep.subr.mxu0 0.0
    %1293 = vmatpush1.msra.mxu0 0.0
    %1294 = vmatprep.subr.mxu0 0.0
    %1295 = vmatpush1.msra.mxu0 0.0
    %1296 = vmatprep.subr.mxu0 0.0
    %1297 = vmatpush1.msra.mxu0 0.0
    %1298 = vmatprep.subr.mxu0 0.0
    %1299 = vmatpush1.msra.mxu0 0.0
    %1300 = vmatprep.subr.mxu0 0.0
    %1301 = vmatpush1.msra.mxu0 0.0
    %1302 = vmatprep.subr.mxu0 0.0
    %1303 = vmatpush1.msra.mxu0 0.0
    %1304 = vmatprep.subr.mxu0 0.0
    %1305 = vmatpush1.msra.mxu0 0.0
    %1306 = vmatprep.subr.mxu0 0.0
    %1307 = vmatpush1.msra.mxu0 0.0
    %1308 = vmatprep.subr.mxu0 0.0
    %1309 = vmatpush1.msra.mxu0 0.0
    %1310 = vmatprep.subr.mxu0 0.0
    %1311 = vmatpush1.msra.mxu0 0.0
    %1312 = vmatprep.subr.mxu0 0.0
    %1313 = vmatpush1.msra.mxu0 0.0
    %1314 = vmatprep.subr.mxu0 0.0
    %1315 = vmatpush1.msra.mxu0 0.0
    %1316 = vmatprep.subr.mxu0 0.0
    %1317 = vmatpush1.msra.mxu0 0.0
    %1318 = vmatprep.subr.mxu0 0.0
    %1319 = vmatpush1.msra.mxu0 0.0
    %1320 = vmatprep.subr.mxu0 0.0
    %1321 = vmatpush1.msra.mxu0 0.0
    %1322 = vmatprep.subr.mxu0 0.0
    %1323 = vmatpush1.msra.mxu0 0.0
    %1324 = vmatprep.subr.mxu0 0.0
    %1325 = vmatpush1.msra.mxu0 0.0
    %1326 = vmatprep.subr.mxu0 0.0
    %1327 = vmatpush1.msra.mxu0 0.0
    %1328 = vmatprep.subr.mxu0 0.0
    %1329 = vmatpush1.msra.mxu0 0.0
    %1330 = vmatprep.subr.mxu0 0.0
    %1331 = vmatpush1.msra.mxu0 0.0
    %1332 = vmatprep.subr.mxu0 0.0
    %1333 = vmatpush1.msra.mxu0 0.0
    %1334 = vmatprep.subr.mxu0 0.0
    %1335 = vmatpush1.msra.mxu0 0.0
    %1336 = vmatprep.subr.mxu0 0.0
    %1337 = vmatpush1.msra.mxu0 0.0
    %1338 = vmatprep.subr.mxu0 0.0
    %1339 = vmatpush1.msra.mxu0 0.0
    %1340 = vmatprep.subr.mxu0 0.0
    %1341 = vmatpush1.msra.mxu0 0.0
    %1342 = vmatprep.subr.mxu0 0.0
    %1343 = vmatpush1.msra.mxu0 0.0
    %1344 = vmatprep.subr.mxu0 0.0
    %1345 = vmatpush1.msra.mxu0 0.0
    %1346 = vmatprep.mubr.f32.mxu0 0.0
    %1347 = vmatmul.mubr.f32.gmra.mrb[0].mxu0 %v1280
    %v1348 = vpop.f32.mrb[0].mxu0
    %v1349 = vadd.f32 0.0, %v1348
    %v1350 = vpop.f32.mrb[0].mxu0
    %1351 = vdwg.mxu0
    %v1353 = vsel %vm376, %v1107, 0
    %1355 = vmatprep.subr.mxu0 0.0
    %1356 = vmatpush1.msra.mxu0 %v1110
    %1357 = vmatprep.subr.mxu0 0.0
    %1358 = vmatpush1.msra.mxu0 %v1111
    %1359 = vmatprep.subr.mxu0 0.0
    %1360 = vmatpush1.msra.mxu0 0.0
    %1361 = vmatprep.subr.mxu0 0.0
    %1362 = vmatpush1.msra.mxu0 0.0
    %1363 = vmatprep.subr.mxu0 0.0
    %1364 = vmatpush1.msra.mxu0 0.0
    %1365 = vmatprep.subr.mxu0 0.0
    %1366 = vmatpush1.msra.mxu0 0.0
    %1367 = vmatprep.subr.mxu0 0.0
    %1368 = vmatpush1.msra.mxu0 0.0
    %1369 = vmatprep.subr.mxu0 0.0
    %1370 = vmatpush1.msra.mxu0 0.0
    %1371 = vmatprep.subr.mxu0 0.0
    %1372 = vmatpush1.msra.mxu0 0.0
    %1373 = vmatprep.subr.mxu0 0.0
    %1374 = vmatpush1.msra.mxu0 0.0
    %1375 = vmatprep.subr.mxu0 0.0
    %1376 = vmatpush1.msra.mxu0 0.0
    %1377 = vmatprep.subr.mxu0 0.0
    %1378 = vmatpush1.msra.mxu0 0.0
    %1379 = vmatprep.subr.mxu0 0.0
    %1380 = vmatpush1.msra.mxu0 0.0
    %1381 = vmatprep.subr.mxu0 0.0
    %1382 = vmatpush1.msra.mxu0 0.0
    %1383 = vmatprep.subr.mxu0 0.0
    %1384 = vmatpush1.msra.mxu0 0.0
    %1385 = vmatprep.subr.mxu0 0.0
    %1386 = vmatpush1.msra.mxu0 0.0
    %1387 = vmatprep.subr.mxu0 0.0
    %1388 = vmatpush1.msra.mxu0 0.0
    %1389 = vmatprep.subr.mxu0 0.0
    %1390 = vmatpush1.msra.mxu0 0.0
    %1391 = vmatprep.subr.mxu0 0.0
    %1392 = vmatpush1.msra.mxu0 0.0
    %1393 = vmatprep.subr.mxu0 0.0
    %1394 = vmatpush1.msra.mxu0 0.0
    %1395 = vmatprep.subr.mxu0 0.0
    %1396 = vmatpush1.msra.mxu0 0.0
    %1397 = vmatprep.subr.mxu0 0.0
    %1398 = vmatpush1.msra.mxu0 0.0
    %1399 = vmatprep.subr.mxu0 0.0
    %1400 = vmatpush1.msra.mxu0 0.0
    %1401 = vmatprep.subr.mxu0 0.0
    %1402 = vmatpush1.msra.mxu0 0.0
    %1403 = vmatprep.subr.mxu0 0.0
    %1404 = vmatpush1.msra.mxu0 0.0
    %1405 = vmatprep.subr.mxu0 0.0
    %1406 = vmatpush1.msra.mxu0 0.0
    %1407 = vmatprep.subr.mxu0 0.0
    %1408 = vmatpush1.msra.mxu0 0.0
    %1409 = vmatprep.subr.mxu0 0.0
    %1410 = vmatpush1.msra.mxu0 0.0
    %1411 = vmatprep.subr.mxu0 0.0
    %1412 = vmatpush1.msra.mxu0 0.0
    %1413 = vmatprep.subr.mxu0 0.0
    %1414 = vmatpush1.msra.mxu0 0.0
    %1415 = vmatprep.subr.mxu0 0.0
    %1416 = vmatpush1.msra.mxu0 0.0
    %1417 = vmatprep.subr.mxu0 0.0
    %1418 = vmatpush1.msra.mxu0 0.0
    %1419 = vmatprep.mubr.f32.mxu0 0.0
    %1420 = vmatmul.mubr.f32.gmra.mrb[0].mxu0 %v1353
    %v1421 = vpop.f32.mrb[0].mxu0
    %v1422 = vadd.f32 %v1349, %v1421
    %v1423 = vpop.f32.mrb[0].mxu0
    %1424 = vdwg.mxu0
    %v1425 = vadd.f32 %v1422, %v858
    %v1427 = vsel %vm108, %v1425, 0
    %1429 = vmatprep.subr.mxu0 0.0
    %1430 = vmatpush1.xpose.msra.mxu0 %v1427
    %1431 = vmatprep.subr.mxu0 0.0
    %1432 = vmatpush1.xpose.msra.mxu0 0.0
    %1433 = vmatprep.subr.mxu0 0.0
    %1434 = vmatpush1.xpose.msra.mxu0 0.0
    %1435 = vmatprep.subr.mxu0 0.0
    %1436 = vmatpush1.xpose.msra.mxu0 0.0
    %1437 = vmatprep.subr.mxu0 0.0
    %1438 = vmatpush1.xpose.msra.mxu0 0.0
    %1439 = vmatprep.subr.mxu0 0.0
    %1440 = vmatpush1.xpose.msra.mxu0 0.0
    %1441 = vmatprep.subr.mxu0 0.0
    %1442 = vmatpush1.xpose.msra.mxu0 0.0
    %1443 = vmatprep.subr.mxu0 0.0
    %1444 = vmatpush1.xpose.msra.mxu0 0.0
    %1445 = vmatprep.subr.mxu0 0.0
    %1446 = vmatpush1.xpose.msra.mxu0 0.0
    %1447 = vmatprep.subr.mxu0 0.0
    %1448 = vmatpush1.xpose.msra.mxu0 0.0
    %1449 = vmatprep.subr.mxu0 0.0
    %1450 = vmatpush1.xpose.msra.mxu0 0.0
    %1451 = vmatprep.subr.mxu0 0.0
    %1452 = vmatpush1.xpose.msra.mxu0 0.0
    %1453 = vmatprep.subr.mxu0 0.0
    %1454 = vmatpush1.xpose.msra.mxu0 0.0
    %1455 = vmatprep.subr.mxu0 0.0
    %1456 = vmatpush1.xpose.msra.mxu0 0.0
    %1457 = vmatprep.subr.mxu0 0.0
    %1458 = vmatpush1.xpose.msra.mxu0 0.0
    %1459 = vmatprep.subr.mxu0 0.0
    %1460 = vmatpush1.xpose.msra.mxu0 0.0
    %1461 = vmatprep.subr.mxu0 0.0
    %1462 = vmatpush1.xpose.msra.mxu0 0.0
    %1463 = vmatprep.subr.mxu0 0.0
    %1464 = vmatpush1.xpose.msra.mxu0 0.0
    %1465 = vmatprep.subr.mxu0 0.0
    %1466 = vmatpush1.xpose.msra.mxu0 0.0
    %1467 = vmatprep.subr.mxu0 0.0
    %1468 = vmatpush1.xpose.msra.mxu0 0.0
    %1469 = vmatprep.subr.mxu0 0.0
    %1470 = vmatpush1.xpose.msra.mxu0 0.0
    %1471 = vmatprep.subr.mxu0 0.0
    %1472 = vmatpush1.xpose.msra.mxu0 0.0
    %1473 = vmatprep.subr.mxu0 0.0
    %1474 = vmatpush1.xpose.msra.mxu0 0.0
    %1475 = vmatprep.subr.mxu0 0.0
    %1476 = vmatpush1.xpose.msra.mxu0 0.0
    %1477 = vmatprep.subr.mxu0 0.0
    %1478 = vmatpush1.xpose.msra.mxu0 0.0
    %1479 = vmatprep.subr.mxu0 0.0
    %1480 = vmatpush1.xpose.msra.mxu0 0.0
    %1481 = vmatprep.subr.mxu0 0.0
    %1482 = vmatpush1.xpose.msra.mxu0 0.0
    %1483 = vmatprep.subr.mxu0 0.0
    %1484 = vmatpush1.xpose.msra.mxu0 0.0
    %1485 = vmatprep.subr.mxu0 0.0
    %1486 = vmatpush1.xpose.msra.mxu0 0.0
    %1487 = vmatprep.subr.mxu0 0.0
    %1488 = vmatpush1.xpose.msra.mxu0 0.0
    %1489 = vmatprep.subr.mxu0 0.0
    %1490 = vmatpush1.xpose.msra.mxu0 0.0
    %1491 = vmatprep.subr.mxu0 0.0
    %1492 = vmatpush1.xpose.msra.mxu0 0.0
    %1493 = vmatprep.mubr.f32.mxu0 0.0
    %1494 = vmatmul.mubr.f32.gmra.mrb[0].mxu0 %v1427
    %v1495 = vpop.f32.mrb[0].mxu0
    %v1496 = vadd.f32 0.0, %v1495
    %v1497 = vpop.f32.mrb[0].mxu0
    %1498 = vdwg.mxu0
    %v1499 = vtanh.pop %v1496
    %v1500 = vmax.f32 %v1499, 0.0
    %v1501 = vsel %vm451, %v1500, 0.0
    %1502 = vadd.xlane.f32.xlu0 %v1501
    %v1503 = vpop.xlane.xlu0 %1502
    %v1504 = vadd.f32 %v1503, 1e-06
    %v1505 = vrcp.pop %v1504
    %v1506 = vmul.f32 %v1500, %v1505
    %s1507 = scalar_lea.vmem [#allocation11], 8
    %1508 = vst.msk [vmem:[%s1507] sm:$0xff] %vm451, %v1506
    %s1509 = scalar_lea.vmem [#allocation11], 24
    %1510 = vst.msk [vmem:[%s1509] sm:$0xff] %vm451, %v1500
    %s1511 = scalar_lea.vmem [#allocation11], 40
    %1512 = vst.msk [vmem:[%s1511] sm:$0xff] %vm451, %v1496
    // Predicated region
    $region50: #{tpu_custom_call.1} parent=1 // pred_check
      _
    $region51: #{tpu_custom_call.1} parent=1 // pred_check_branch
      %1514 = sbr.rel (0) target = $region53
    $region52: #{tpu_custom_call.1} parent=1 // pred_region
      %s1516 = ssub.s32 768, 768
      %1517 = vsyncadd [#allocation4], %s1516
      %s1518 = sshll.u32 [#allocation11], 4
      %s1519 = int_to_ptr.vmem [resolvable:$true] %s1518
      %1524 = dma.vmem_to_hbm [thread:$0]  %s1519, 768, %s7, [#allocation4], 128, 128, 8
    $region53: #{tpu_custom_call.1} parent=1 // pred_fallthru
      _
    // Predicated region
    $region54: #{tpu_custom_call.1} parent=1 // pred_check
      _
    $region55: #{tpu_custom_call.1} parent=1 // pred_check_branch
      %1526 = sbr.rel (0) target = $region57
    $region56: #{tpu_custom_call.1} parent=1 // pred_region
      %1527 = dma.done [#allocation4], 768
    $region57: #{tpu_custom_call.1} parent=1 // pred_fallthru
      _
    %1528 = vsyncpa [#allocation3], 1
    %1529 = vsyncpa [#allocation6], 1
    %1530 = vsyncpa [#allocation9], 1
    %1531 = vsyncpa [#allocation4], 1

</llo_original>
